<compile_context>
chip_gen: v6e
topology: v6e:2x2x1
jax: 0.10.0
libtpu: 0.0.40
codegen_flags: <defaults>
</compile_context>

<pallas_src>
import numpy as np

import jax
import jax.numpy as jnp
from jax.experimental import pallas as pl
from jax.experimental.pallas import tpu as pltpu

EPS = 1e-5
P_HI = jax.lax.Precision.HIGHEST
TAP_PAD = 128          # per-tap lane block inside G_cat (vreg-aligned slicing)


def _round_up(a, b):
    return -(-a // b) * b


def _param_layout(n):
    """Lane offsets inside the packed (rows, lanes) f32 parameter slab."""
    c0, c1, c2 = 4, 8, 16
    lay = {}
    off = 0
    lay['w0'] = off;  off += TAP_PAD                          # (n*4,  n*3)
    lay['wc1'] = off; off += _round_up(9 * n * c0, TAP_PAD)   # (n*8,  9*n*4)
    lay['wc2'] = off; off += _round_up(9 * n * c1, TAP_PAD)   # (n*16, 9*n*8)
    lay['wf'] = off;  off += TAP_PAD                          # (n,    n*16)
    vec_names = ('b0', 'gam0', 'bet0', 'bp1', 'gam1', 'bet1',
                 'bp2', 'gam2', 'bet2', 'gam3', 'bet3', 'bf')
    for i, nm in enumerate(vec_names):
        lay[nm] = off + i                                     # one lane each
    off += 16
    lay['m0'] = off; off += n * c0                            # (n*4,  n*4)
    lay['m1'] = off; off += n * c1                            # (n*8,  n*8)
    lay['m2'] = off; off += n * c2                            # (n*16, n*16)
    rows = max(8, n * c2)
    lanes = _round_up(off, TAP_PAD)
    return lay, rows, lanes


# --------------------------------------------------------------------------
# Fused Pallas kernel: the whole forward pass in one launch, no grid.
# --------------------------------------------------------------------------

def tmnet_kernel(x_ref, g1_ref, g2_ref, p_ref, o_ref):
    n = x_ref.shape[0] // 3
    s0 = x_ref.shape[1]
    c0, c1, c2 = 4, 8, 16
    assert g1_ref.shape[1] == 9 * TAP_PAD and g2_ref.shape[1] == 9 * TAP_PAD
    lay, _, _ = _param_layout(n)

    def vec(name, rows):
        return p_ref[0:rows, lay[name]:lay[name] + 1]               # (rows, 1)

    def bn(f, gname, bname, mname):
        # Training-mode BatchNorm.  Per-channel stats over batch+spatial:
        # lane reduce per row, then the tiny precomputed matrix M combines the
        # batch rows of each channel, divides by the element count and
        # broadcasts the result back to every row.
        rows = f.shape[0]
        mdiv = p_ref[0:rows, lay[mname]:lay[mname] + rows]           # (rows, rows)
        s1 = jnp.sum(f, axis=1, keepdims=True)
        s2 = jnp.sum(f * f, axis=1, keepdims=True)
        mean = jnp.dot(mdiv, s1, preferred_element_type=jnp.float32)
        ex2 = jnp.dot(mdiv, s2, preferred_element_type=jnp.float32)
        var = ex2 - mean * mean            # single-pass (fine at these scales)
        scale = vec(gname, rows) * jax.lax.rsqrt(var + EPS)
        shift = vec(bname, rows) - mean * scale
        return f * scale + shift

    def downsample(f, g_ref, wname, cin, cout, sout, bias_name,
                   gname, bname, mname):
        # Depthwise 3x3 / stride-2 / pad-1  +  1x1 conv, folded into:
        #   taps = f @ G_cat                (one wide gather matmul)
        #   y    = Wc_stack @ stack_t(taps) (one folded pointwise matmul)
        taps = jnp.dot(f, g_ref[...],
                       preferred_element_type=jnp.float32)           # (n*cin, 9*128)
        stk = jnp.concatenate(
            [taps[:, t * TAP_PAD:(t + 1) * TAP_PAD] for t in range(9)],
            axis=0)                                                   # (9*n*cin, 128)
        wc = p_ref[0:n * cout, lay[wname]:lay[wname] + 9 * n * cin]
        y = jnp.dot(wc, stk, preferred_element_type=jnp.float32)     # (n*cout, 128)
        y = y[:, 0:sout] + vec(bias_name, n * cout)
        return bn(y, gname, bname, mname)

    # ---- stem: Conv2d(3,4,1) + BN(4) ----
    w0 = p_ref[0:n * c0, lay['w0']:lay['w0'] + n * 3]
    f = (jnp.dot(w0, x_ref[...], preferred_element_type=jnp.float32)
         + vec('b0', n * c0))
    f = bn(f, 'gam0', 'bet0', 'm0')

    # ---- backbone ----
    f = downsample(f, g1_ref, 'wc1', c0, c1, s0 // 4,
                   'bp1', 'gam1', 'bet1', 'm1')
    f = downsample(f, g2_ref, 'wc2', c1, c2, s0 // 16,
                   'bp2', 'gam2', 'bet2', 'm2')
    f = bn(f, 'gam3', 'bet3', 'm2')

    # ---- final Conv2d(16,1,1) ----
    wf = p_ref[0:n, lay['wf']:lay['wf'] + n * c2]
    o_ref[...] = (jnp.dot(wf, f, preferred_element_type=jnp.float32)
                  + vec('bf', n))


# --------------------------------------------------------------------------
# One-time parameter / layout preparation (outside the per-call path)
# --------------------------------------------------------------------------

def _gather_cat(h, w):
    """G_cat (h*w, 9*128): 0/1 gather matrix realizing the stride-2, 3x3,
    pad-1 tap extraction; tap t occupies lanes [t*128, t*128 + oh*ow)."""
    oh, ow = h // 2, w // 2
    g = np.zeros((h * w, 9 * TAP_PAD), np.float32)
    for kh in range(3):
        for kw in range(3):
            t = kh * 3 + kw
            for i in range(oh):
                hi = 2 * i + kh - 1
                if hi < 0 or hi >= h:
                    continue
                for j in range(ow):
                    wj = 2 * j + kw - 1
                    if wj < 0 or wj >= w:
                        continue
                    g[hi * w + wj, t * TAP_PAD + i * ow + j] = 1.0
    return g


def _block_diag(w, n):
    w = np.asarray(w, np.float64)
    o, i = w.shape
    out = np.zeros((n * o, n * i), np.float64)
    for b in range(n):
        out[b * o:(b + 1) * o, b * i:(b + 1) * i] = w
    return out


def _fold_ds_weights(wd, wp, n):
    """Fold depthwise (2*Cin,1,3,3) + pointwise (Cout,Cout) weights into the
    batch-block-diagonal, tap-stacked matrix used by the kernel:
      W[b*Cout+o, t*(n*Cin) + b*Cin + c] = sum_p wp[o,2c+p] * wd[2c+p,0,t]."""
    wp = np.asarray(wp, np.float64)
    wd = np.asarray(wd, np.float64)
    cout = wp.shape[0]
    cin = cout // 2
    wd_r = wd.reshape(cin, 2, 9)                 # [c, p, t]
    wp_r = wp.reshape(cout, cin, 2)              # [o, c, p]
    wc = np.einsum('ocp,cpt->toc', wp_r, wd_r)   # (9, cout, cin)
    out = np.zeros((n * cout, 9 * n * cin), np.float64)
    for t in range(9):
        for b in range(n):
            out[b * cout:(b + 1) * cout,
                t * n * cin + b * cin: t * n * cin + (b + 1) * cin] = wc[t]
    return out


def _combine(c, n, count):
    """(n*c, n*c) matrix combining per-row sums of a channel across batch
    copies, dividing by the element count, broadcast back to every row."""
    m = np.zeros((n * c, n * c), np.float64)
    for r in range(n * c):
        for r2 in range(n * c):
            if r % c == r2 % c:
                m[r, r2] = 1.0 / count
    return m


def prepare_params(p, n, h, w):
    """One-time prep: f32 gather matrices + packed (rows, lanes) param slab."""
    assert (h // 2) * (w // 2) <= TAP_PAD and (h // 4) * (w // 4) <= TAP_PAD
    lay, rows, lanes = _param_layout(n)
    pp = np.zeros((rows, lanes), np.float64)

    def put(mat, col):
        mat = np.asarray(mat)
        pp[0:mat.shape[0], col:col + mat.shape[1]] = mat

    put(_block_diag(p['w0'], n), lay['w0'])
    put(_fold_ds_weights(p['wd1'], p['wp1'], n), lay['wc1'])
    put(_fold_ds_weights(p['wd2'], p['wp2'], n), lay['wc2'])
    put(_block_diag(p['wf'], n), lay['wf'])
    for nm, src in (('b0', 'b0'), ('gam0', 'g0'), ('bet0', 'be0'),
                    ('bp1', 'bp1'), ('gam1', 'g1'), ('bet1', 'be1'),
                    ('bp2', 'bp2'), ('gam2', 'g2'), ('bet2', 'be2'),
                    ('gam3', 'g3'), ('bet3', 'be3'), ('bf', 'bf')):
        put(np.tile(np.asarray(p[src], np.float64), n).reshape(-1, 1), lay[nm])
    s0 = h * w
    put(_combine(4, n, n * s0), lay['m0'])
    put(_combine(8, n, n * (s0 // 4)), lay['m1'])
    put(_combine(16, n, n * (s0 // 16)), lay['m2'])

    gcat1 = _gather_cat(h, w)
    gcat2 = _gather_cat(h // 2, w // 2)
    return (jnp.asarray(gcat1, jnp.float32),
            jnp.asarray(gcat2, jnp.float32),
            jnp.asarray(pp, jnp.float32))


# --------------------------------------------------------------------------
# Jitted forward: reshape -> single 4-operand pallas_call -> reshape
# --------------------------------------------------------------------------

@jax.jit
def tmnet_forward(x_nchw, gcat1, gcat2, pp):
    n, c, h, w = x_nchw.shape
    oh, ow = h // 4, w // 4
    x_r = x_nchw.astype(jnp.float32).reshape(n * c, h * w)      # free reshape
    vmem = pl.BlockSpec(memory_space=pltpu.MemorySpace.VMEM)
    out = pl.pallas_call(
        tmnet_kernel,
        out_shape=jax.ShapeDtypeStruct((n, oh * ow), jnp.float32),
        in_specs=[vmem, vmem, vmem, vmem],
        out_specs=vmem,
    )(x_r, gcat1, gcat2, pp)
    return out.reshape(n, 1, oh, ow)


# --------------------------------------------------------------------------
# Deterministic parameter init (torch-layout shapes from TMNetModel.__init__)
# --------------------------------------------------------------------------

def init_params(key):
    ks = jax.random.split(key, 18)
    nrm = lambda k, s, sc: sc * jax.random.normal(k, s, jnp.float32)
    p = {}
    p['w0'] = nrm(ks[0], (4, 3), 0.6)           # Conv2d(3,4,1) weight (O, I)
    p['b0'] = nrm(ks[1], (4,), 0.1)
    p['g0'] = 1.0 + nrm(ks[2], (4,), 0.1)
    p['be0'] = nrm(ks[3], (4,), 0.1)
    p['wd1'] = nrm(ks[4], (8, 1, 3, 3), 0.4)    # depthwise, groups=4
    p['wp1'] = nrm(ks[5], (8, 8), 0.4)          # 1x1, (Cout, Cin)
    p['bp1'] = nrm(ks[6], (8,), 0.1)
    p['g1'] = 1.0 + nrm(ks[7], (8,), 0.1)
    p['be1'] = nrm(ks[8], (8,), 0.1)
    p['wd2'] = nrm(ks[9], (16, 1, 3, 3), 0.4)   # depthwise, groups=8
    p['wp2'] = nrm(ks[10], (16, 16), 0.3)
    p['bp2'] = nrm(ks[11], (16,), 0.1)
    p['g2'] = 1.0 + nrm(ks[12], (16,), 0.1)
    p['be2'] = nrm(ks[13], (16,), 0.1)
    p['g3'] = 1.0 + nrm(ks[14], (16,), 0.1)
    p['be3'] = nrm(ks[15], (16,), 0.1)
    p['wf'] = nrm(ks[16], (1, 16), 0.3)         # Conv2d(16,1,1) weight (O, I)
    p['bf'] = nrm(ks[17], (1,), 0.1)
    return p


# --------------------------------------------------------------------------
# Pure-JAX reference (NCHW, training-mode BatchNorm, full-f32 precision)
# --------------------------------------------------------------------------

def reference_forward(x, p):
    def bn(y, g, b):
        m = jnp.mean(y, axis=(0, 2, 3), keepdims=True)
        v = jnp.mean((y - m) ** 2, axis=(0, 2, 3), keepdims=True)
        return (g.reshape(1, -1, 1, 1) * (y - m) * jax.lax.rsqrt(v + EPS)
                + b.reshape(1, -1, 1, 1))

    def conv1x1(y, w_oi, b):
        return (jnp.einsum('nchw,oc->nohw', y, w_oi, precision=P_HI)
                + b.reshape(1, -1, 1, 1))

    def ds(y, wd, wp, bp, g, b, groups):
        y = jax.lax.conv_general_dilated(
            y, wd, window_strides=(2, 2), padding=((1, 1), (1, 1)),
            feature_group_count=groups,
            dimension_numbers=('NCHW', 'OIHW', 'NCHW'), precision=P_HI)
        return bn(conv1x1(y, wp, bp), g, b)

    y = bn(conv1x1(x, p['w0'], p['b0']), p['g0'], p['be0'])
    y = ds(y, p['wd1'], p['wp1'], p['bp1'], p['g1'], p['be1'], 4)
    y = ds(y, p['wd2'], p['wp2'], p['bp2'], p['g2'], p['be2'], 8)
    y = bn(y, p['g3'], p['be3'])
    y = conv1x1(y, p['wf'], p['bf'])
    return y


if __name__ == "__main__":
    key = jax.random.PRNGKey(0)
    kx, kparam = jax.random.split(key)
    N, H, W = 2, 16, 16
    x = jax.random.normal(kx, (N, 3, H, W), jnp.float32)       # NCHW, like PyTorch
    params = init_params(kparam)
    gcat1, gcat2, pp = prepare_params(params, N, H, W)         # one-time prep

    out = jax.block_until_ready(tmnet_forward(x, gcat1, gcat2, pp))
    assert out.shape == (N, 1, H // 4, W // 4), out.shape

    ref = reference_forward(x, params)
    np.testing.assert_allclose(np.asarray(out), np.asarray(ref),
                               rtol=1e-3, atol=1e-3)
    print("KERNEL_OK")
</pallas_src>

<mosaic_0001>
module attributes {stable_mosaic.version = 11 : i64} {
  func.func @tmnet_kernel(%arg0: memref<6x256xf32, #tpu.memory_space<vmem>>, %arg1: memref<256x1152xf32, #tpu.memory_space<vmem>>, %arg2: memref<64x1152xf32, #tpu.memory_space<vmem>>, %arg3: memref<32x768xf32, #tpu.memory_space<vmem>>, %arg4: memref<2x16xf32, #tpu.memory_space<vmem>>) attributes {dimension_semantics = [], scalar_prefetch = 0 : i64, scratch_operands = 0 : i64, tpu.core_type = #tpu.core_type<tc>} {
    %c0 = arith.constant 0 : index
    %c0_0 = arith.constant 0 : index
    %0 = vector.load %arg3[%c0, %c0_0] : memref<32x768xf32, #tpu.memory_space<vmem>>, vector<8x6xf32>
    %c0_1 = arith.constant 0 : index
    %c0_2 = arith.constant 0 : index
    %1 = vector.load %arg0[%c0_1, %c0_2] : memref<6x256xf32, #tpu.memory_space<vmem>>, vector<6x256xf32>
    %cst = arith.constant dense<0.000000e+00> : vector<8x256xf32>
    %2 = tpu.matmul %0, %1, %cst {dimension_numbers = #tpu.dot_dimension_numbers<[1], [0], [0], [1], [0, 0, 1, 1], [], []>} : vector<8x6xf32>, vector<6x256xf32>, vector<8x256xf32> -> vector<8x256xf32>
    %c0_3 = arith.constant 0 : index
    %c640 = arith.constant 640 : index
    %3 = vector.load %arg3[%c0_3, %c640] : memref<32x768xf32, #tpu.memory_space<vmem>>, vector<8x1xf32>
    %4 = vector.broadcast %3 : vector<8x1xf32> to vector<8x256xf32>
    %5 = arith.addf %2, %4 : vector<8x256xf32>
    %c0_4 = arith.constant 0 : index
    %c656 = arith.constant 656 : index
    %6 = vector.load %arg3[%c0_4, %c656] : memref<32x768xf32, #tpu.memory_space<vmem>>, vector<8x8xf32>
    %cst_5 = arith.constant dense<0.000000e+00> : vector<8xf32>
    %7 = vector.multi_reduction <add>, %5, %cst_5 [1] : vector<8x256xf32> to vector<8xf32>
    %8 = vector.shape_cast %7 : vector<8xf32> to vector<8x1xf32>
    %9 = arith.mulf %5, %5 : vector<8x256xf32>
    %cst_6 = arith.constant dense<0.000000e+00> : vector<8xf32>
    %10 = vector.multi_reduction <add>, %9, %cst_6 [1] : vector<8x256xf32> to vector<8xf32>
    %11 = vector.shape_cast %10 : vector<8xf32> to vector<8x1xf32>
    %cst_7 = arith.constant dense<0.000000e+00> : vector<8x1xf32>
    %12 = tpu.matmul %6, %8, %cst_7 {dimension_numbers = #tpu.dot_dimension_numbers<[1], [0], [0], [1], [0, 0, 1, 1], [], []>} : vector<8x8xf32>, vector<8x1xf32>, vector<8x1xf32> -> vector<8x1xf32>
    %cst_8 = arith.constant dense<0.000000e+00> : vector<8x1xf32>
    %13 = tpu.matmul %6, %11, %cst_8 {dimension_numbers = #tpu.dot_dimension_numbers<[1], [0], [0], [1], [0, 0, 1, 1], [], []>} : vector<8x8xf32>, vector<8x1xf32>, vector<8x1xf32> -> vector<8x1xf32>
    %14 = arith.mulf %12, %12 : vector<8x1xf32>
    %15 = arith.subf %13, %14 : vector<8x1xf32>
    %c0_9 = arith.constant 0 : index
    %c641 = arith.constant 641 : index
    %16 = vector.load %arg3[%c0_9, %c641] : memref<32x768xf32, #tpu.memory_space<vmem>>, vector<8x1xf32>
    %cst_10 = arith.constant 9.99999974E-6 : f32
    %17 = vector.broadcast %cst_10 : f32 to vector<8x1xf32>
    %18 = arith.addf %15, %17 : vector<8x1xf32>
    %19 = math.rsqrt %18 : vector<8x1xf32>
    %20 = arith.mulf %16, %19 : vector<8x1xf32>
    %c0_11 = arith.constant 0 : index
    %c642 = arith.constant 642 : index
    %21 = vector.load %arg3[%c0_11, %c642] : memref<32x768xf32, #tpu.memory_space<vmem>>, vector<8x1xf32>
    %22 = arith.mulf %12, %20 : vector<8x1xf32>
    %23 = arith.subf %21, %22 : vector<8x1xf32>
    %24 = vector.broadcast %20 : vector<8x1xf32> to vector<8x256xf32>
    %25 = arith.mulf %5, %24 : vector<8x256xf32>
    %26 = vector.broadcast %23 : vector<8x1xf32> to vector<8x256xf32>
    %27 = arith.addf %25, %26 : vector<8x256xf32>
    %c0_12 = arith.constant 0 : index
    %c0_13 = arith.constant 0 : index
    %28 = vector.load %arg1[%c0_12, %c0_13] : memref<256x1152xf32, #tpu.memory_space<vmem>>, vector<256x1152xf32>
    %cst_14 = arith.constant dense<0.000000e+00> : vector<8x1152xf32>
    %29 = tpu.matmul %27, %28, %cst_14 {dimension_numbers = #tpu.dot_dimension_numbers<[1], [0], [0], [1], [0, 0, 1, 1], [], []>} : vector<8x256xf32>, vector<256x1152xf32>, vector<8x1152xf32> -> vector<8x1152xf32>
    %30 = vector.extract_strided_slice %29 {offsets = [0, 0], sizes = [8, 128], strides = [1, 1]} : vector<8x1152xf32> to vector<8x128xf32>
    %31 = vector.extract_strided_slice %29 {offsets = [0, 128], sizes = [8, 128], strides = [1, 1]} : vector<8x1152xf32> to vector<8x128xf32>
    %32 = vector.extract_strided_slice %29 {offsets = [0, 256], sizes = [8, 128], strides = [1, 1]} : vector<8x1152xf32> to vector<8x128xf32>
    %33 = vector.extract_strided_slice %29 {offsets = [0, 384], sizes = [8, 128], strides = [1, 1]} : vector<8x1152xf32> to vector<8x128xf32>
    %34 = vector.extract_strided_slice %29 {offsets = [0, 512], sizes = [8, 128], strides = [1, 1]} : vector<8x1152xf32> to vector<8x128xf32>
    %35 = vector.extract_strided_slice %29 {offsets = [0, 640], sizes = [8, 128], strides = [1, 1]} : vector<8x1152xf32> to vector<8x128xf32>
    %36 = vector.extract_strided_slice %29 {offsets = [0, 768], sizes = [8, 128], strides = [1, 1]} : vector<8x1152xf32> to vector<8x128xf32>
    %37 = vector.extract_strided_slice %29 {offsets = [0, 896], sizes = [8, 128], strides = [1, 1]} : vector<8x1152xf32> to vector<8x128xf32>
    %38 = vector.extract_strided_slice %29 {offsets = [0, 1024], sizes = [8, 128], strides = [1, 1]} : vector<8x1152xf32> to vector<8x128xf32>
    %39 = tpu.concatenate %30, %31, %32, %33, %34, %35, %36, %37, %38 in 0 : vector<8x128xf32>, vector<8x128xf32>, vector<8x128xf32>, vector<8x128xf32>, vector<8x128xf32>, vector<8x128xf32>, vector<8x128xf32>, vector<8x128xf32>, vector<8x128xf32> -> vector<72x128xf32>
    %c0_15 = arith.constant 0 : index
    %c128 = arith.constant 128 : index
    %40 = vector.load %arg3[%c0_15, %c128] : memref<32x768xf32, #tpu.memory_space<vmem>>, vector<16x72xf32>
    %cst_16 = arith.constant dense<0.000000e+00> : vector<16x128xf32>
    %41 = tpu.matmul %40, %39, %cst_16 {dimension_numbers = #tpu.dot_dimension_numbers<[1], [0], [0], [1], [0, 0, 1, 1], [], []>} : vector<16x72xf32>, vector<72x128xf32>, vector<16x128xf32> -> vector<16x128xf32>
    %42 = vector.extract_strided_slice %41 {offsets = [0, 0], sizes = [16, 64], strides = [1, 1]} : vector<16x128xf32> to vector<16x64xf32>
    %c0_17 = arith.constant 0 : index
    %c643 = arith.constant 643 : index
    %43 = vector.load %arg3[%c0_17, %c643] : memref<32x768xf32, #tpu.memory_space<vmem>>, vector<16x1xf32>
    %44 = vector.broadcast %43 : vector<16x1xf32> to vector<16x64xf32>
    %45 = arith.addf %42, %44 : vector<16x64xf32>
    %c0_18 = arith.constant 0 : index
    %c664 = arith.constant 664 : index
    %46 = vector.load %arg3[%c0_18, %c664] : memref<32x768xf32, #tpu.memory_space<vmem>>, vector<16x16xf32>
    %cst_19 = arith.constant dense<0.000000e+00> : vector<16xf32>
    %47 = vector.multi_reduction <add>, %45, %cst_19 [1] : vector<16x64xf32> to vector<16xf32>
    %48 = vector.shape_cast %47 : vector<16xf32> to vector<16x1xf32>
    %49 = arith.mulf %45, %45 : vector<16x64xf32>
    %cst_20 = arith.constant dense<0.000000e+00> : vector<16xf32>
    %50 = vector.multi_reduction <add>, %49, %cst_20 [1] : vector<16x64xf32> to vector<16xf32>
    %51 = vector.shape_cast %50 : vector<16xf32> to vector<16x1xf32>
    %cst_21 = arith.constant dense<0.000000e+00> : vector<16x1xf32>
    %52 = tpu.matmul %46, %48, %cst_21 {dimension_numbers = #tpu.dot_dimension_numbers<[1], [0], [0], [1], [0, 0, 1, 1], [], []>} : vector<16x16xf32>, vector<16x1xf32>, vector<16x1xf32> -> vector<16x1xf32>
    %cst_22 = arith.constant dense<0.000000e+00> : vector<16x1xf32>
    %53 = tpu.matmul %46, %51, %cst_22 {dimension_numbers = #tpu.dot_dimension_numbers<[1], [0], [0], [1], [0, 0, 1, 1], [], []>} : vector<16x16xf32>, vector<16x1xf32>, vector<16x1xf32> -> vector<16x1xf32>
    %54 = arith.mulf %52, %52 : vector<16x1xf32>
    %55 = arith.subf %53, %54 : vector<16x1xf32>
    %c0_23 = arith.constant 0 : index
    %c644 = arith.constant 644 : index
    %56 = vector.load %arg3[%c0_23, %c644] : memref<32x768xf32, #tpu.memory_space<vmem>>, vector<16x1xf32>
    %cst_24 = arith.constant 9.99999974E-6 : f32
    %57 = vector.broadcast %cst_24 : f32 to vector<16x1xf32>
    %58 = arith.addf %55, %57 : vector<16x1xf32>
    %59 = math.rsqrt %58 : vector<16x1xf32>
    %60 = arith.mulf %56, %59 : vector<16x1xf32>
    %c0_25 = arith.constant 0 : index
    %c645 = arith.constant 645 : index
    %61 = vector.load %arg3[%c0_25, %c645] : memref<32x768xf32, #tpu.memory_space<vmem>>, vector<16x1xf32>
    %62 = arith.mulf %52, %60 : vector<16x1xf32>
    %63 = arith.subf %61, %62 : vector<16x1xf32>
    %64 = vector.broadcast %60 : vector<16x1xf32> to vector<16x64xf32>
    %65 = arith.mulf %45, %64 : vector<16x64xf32>
    %66 = vector.broadcast %63 : vector<16x1xf32> to vector<16x64xf32>
    %67 = arith.addf %65, %66 : vector<16x64xf32>
    %c0_26 = arith.constant 0 : index
    %c0_27 = arith.constant 0 : index
    %68 = vector.load %arg2[%c0_26, %c0_27] : memref<64x1152xf32, #tpu.memory_space<vmem>>, vector<64x1152xf32>
    %cst_28 = arith.constant dense<0.000000e+00> : vector<16x1152xf32>
    %69 = tpu.matmul %67, %68, %cst_28 {dimension_numbers = #tpu.dot_dimension_numbers<[1], [0], [0], [1], [0, 0, 1, 1], [], []>} : vector<16x64xf32>, vector<64x1152xf32>, vector<16x1152xf32> -> vector<16x1152xf32>
    %70 = vector.extract_strided_slice %69 {offsets = [0, 0], sizes = [16, 128], strides = [1, 1]} : vector<16x1152xf32> to vector<16x128xf32>
    %71 = vector.extract_strided_slice %69 {offsets = [0, 128], sizes = [16, 128], strides = [1, 1]} : vector<16x1152xf32> to vector<16x128xf32>
    %72 = vector.extract_strided_slice %69 {offsets = [0, 256], sizes = [16, 128], strides = [1, 1]} : vector<16x1152xf32> to vector<16x128xf32>
    %73 = vector.extract_strided_slice %69 {offsets = [0, 384], sizes = [16, 128], strides = [1, 1]} : vector<16x1152xf32> to vector<16x128xf32>
    %74 = vector.extract_strided_slice %69 {offsets = [0, 512], sizes = [16, 128], strides = [1, 1]} : vector<16x1152xf32> to vector<16x128xf32>
    %75 = vector.extract_strided_slice %69 {offsets = [0, 640], sizes = [16, 128], strides = [1, 1]} : vector<16x1152xf32> to vector<16x128xf32>
    %76 = vector.extract_strided_slice %69 {offsets = [0, 768], sizes = [16, 128], strides = [1, 1]} : vector<16x1152xf32> to vector<16x128xf32>
    %77 = vector.extract_strided_slice %69 {offsets = [0, 896], sizes = [16, 128], strides = [1, 1]} : vector<16x1152xf32> to vector<16x128xf32>
    %78 = vector.extract_strided_slice %69 {offsets = [0, 1024], sizes = [16, 128], strides = [1, 1]} : vector<16x1152xf32> to vector<16x128xf32>
    %79 = tpu.concatenate %70, %71, %72, %73, %74, %75, %76, %77, %78 in 0 : vector<16x128xf32>, vector<16x128xf32>, vector<16x128xf32>, vector<16x128xf32>, vector<16x128xf32>, vector<16x128xf32>, vector<16x128xf32>, vector<16x128xf32>, vector<16x128xf32> -> vector<144x128xf32>
    %c0_29 = arith.constant 0 : index
    %c256 = arith.constant 256 : index
    %80 = vector.load %arg3[%c0_29, %c256] : memref<32x768xf32, #tpu.memory_space<vmem>>, vector<32x144xf32>
    %cst_30 = arith.constant dense<0.000000e+00> : vector<32x128xf32>
    %81 = tpu.matmul %80, %79, %cst_30 {dimension_numbers = #tpu.dot_dimension_numbers<[1], [0], [0], [1], [0, 0, 1, 1], [], []>} : vector<32x144xf32>, vector<144x128xf32>, vector<32x128xf32> -> vector<32x128xf32>
    %82 = vector.extract_strided_slice %81 {offsets = [0, 0], sizes = [32, 16], strides = [1, 1]} : vector<32x128xf32> to vector<32x16xf32>
    %c0_31 = arith.constant 0 : index
    %c646 = arith.constant 646 : index
    %83 = vector.load %arg3[%c0_31, %c646] : memref<32x768xf32, #tpu.memory_space<vmem>>, vector<32x1xf32>
    %84 = vector.broadcast %83 : vector<32x1xf32> to vector<32x16xf32>
    %85 = arith.addf %82, %84 : vector<32x16xf32>
    %c0_32 = arith.constant 0 : index
    %c680 = arith.constant 680 : index
    %86 = vector.load %arg3[%c0_32, %c680] : memref<32x768xf32, #tpu.memory_space<vmem>>, vector<32x32xf32>
    %cst_33 = arith.constant dense<0.000000e+00> : vector<32xf32>
    %87 = vector.multi_reduction <add>, %85, %cst_33 [1] : vector<32x16xf32> to vector<32xf32>
    %88 = vector.shape_cast %87 : vector<32xf32> to vector<32x1xf32>
    %89 = arith.mulf %85, %85 : vector<32x16xf32>
    %cst_34 = arith.constant dense<0.000000e+00> : vector<32xf32>
    %90 = vector.multi_reduction <add>, %89, %cst_34 [1] : vector<32x16xf32> to vector<32xf32>
    %91 = vector.shape_cast %90 : vector<32xf32> to vector<32x1xf32>
    %cst_35 = arith.constant dense<0.000000e+00> : vector<32x1xf32>
    %92 = tpu.matmul %86, %88, %cst_35 {dimension_numbers = #tpu.dot_dimension_numbers<[1], [0], [0], [1], [0, 0, 1, 1], [], []>} : vector<32x32xf32>, vector<32x1xf32>, vector<32x1xf32> -> vector<32x1xf32>
    %cst_36 = arith.constant dense<0.000000e+00> : vector<32x1xf32>
    %93 = tpu.matmul %86, %91, %cst_36 {dimension_numbers = #tpu.dot_dimension_numbers<[1], [0], [0], [1], [0, 0, 1, 1], [], []>} : vector<32x32xf32>, vector<32x1xf32>, vector<32x1xf32> -> vector<32x1xf32>
    %94 = arith.mulf %92, %92 : vector<32x1xf32>
    %95 = arith.subf %93, %94 : vector<32x1xf32>
    %c0_37 = arith.constant 0 : index
    %c647 = arith.constant 647 : index
    %96 = vector.load %arg3[%c0_37, %c647] : memref<32x768xf32, #tpu.memory_space<vmem>>, vector<32x1xf32>
    %cst_38 = arith.constant 9.99999974E-6 : f32
    %97 = vector.broadcast %cst_38 : f32 to vector<32x1xf32>
    %98 = arith.addf %95, %97 : vector<32x1xf32>
    %99 = math.rsqrt %98 : vector<32x1xf32>
    %100 = arith.mulf %96, %99 : vector<32x1xf32>
    %c0_39 = arith.constant 0 : index
    %c648 = arith.constant 648 : index
    %101 = vector.load %arg3[%c0_39, %c648] : memref<32x768xf32, #tpu.memory_space<vmem>>, vector<32x1xf32>
    %102 = arith.mulf %92, %100 : vector<32x1xf32>
    %103 = arith.subf %101, %102 : vector<32x1xf32>
    %104 = vector.broadcast %100 : vector<32x1xf32> to vector<32x16xf32>
    %105 = arith.mulf %85, %104 : vector<32x16xf32>
    %106 = vector.broadcast %103 : vector<32x1xf32> to vector<32x16xf32>
    %107 = arith.addf %105, %106 : vector<32x16xf32>
    %c0_40 = arith.constant 0 : index
    %c680_41 = arith.constant 680 : index
    %108 = vector.load %arg3[%c0_40, %c680_41] : memref<32x768xf32, #tpu.memory_space<vmem>>, vector<32x32xf32>
    %cst_42 = arith.constant dense<0.000000e+00> : vector<32xf32>
    %109 = vector.multi_reduction <add>, %107, %cst_42 [1] : vector<32x16xf32> to vector<32xf32>
    %110 = vector.shape_cast %109 : vector<32xf32> to vector<32x1xf32>
    %111 = arith.mulf %107, %107 : vector<32x16xf32>
    %cst_43 = arith.constant dense<0.000000e+00> : vector<32xf32>
    %112 = vector.multi_reduction <add>, %111, %cst_43 [1] : vector<32x16xf32> to vector<32xf32>
    %113 = vector.shape_cast %112 : vector<32xf32> to vector<32x1xf32>
    %cst_44 = arith.constant dense<0.000000e+00> : vector<32x1xf32>
    %114 = tpu.matmul %108, %110, %cst_44 {dimension_numbers = #tpu.dot_dimension_numbers<[1], [0], [0], [1], [0, 0, 1, 1], [], []>} : vector<32x32xf32>, vector<32x1xf32>, vector<32x1xf32> -> vector<32x1xf32>
    %cst_45 = arith.constant dense<0.000000e+00> : vector<32x1xf32>
    %115 = tpu.matmul %108, %113, %cst_45 {dimension_numbers = #tpu.dot_dimension_numbers<[1], [0], [0], [1], [0, 0, 1, 1], [], []>} : vector<32x32xf32>, vector<32x1xf32>, vector<32x1xf32> -> vector<32x1xf32>
    %116 = arith.mulf %114, %114 : vector<32x1xf32>
    %117 = arith.subf %115, %116 : vector<32x1xf32>
    %c0_46 = arith.constant 0 : index
    %c649 = arith.constant 649 : index
    %118 = vector.load %arg3[%c0_46, %c649] : memref<32x768xf32, #tpu.memory_space<vmem>>, vector<32x1xf32>
    %cst_47 = arith.constant 9.99999974E-6 : f32
    %119 = vector.broadcast %cst_47 : f32 to vector<32x1xf32>
    %120 = arith.addf %117, %119 : vector<32x1xf32>
    %121 = math.rsqrt %120 : vector<32x1xf32>
    %122 = arith.mulf %118, %121 : vector<32x1xf32>
    %c0_48 = arith.constant 0 : index
    %c650 = arith.constant 650 : index
    %123 = vector.load %arg3[%c0_48, %c650] : memref<32x768xf32, #tpu.memory_space<vmem>>, vector<32x1xf32>
    %124 = arith.mulf %114, %122 : vector<32x1xf32>
    %125 = arith.subf %123, %124 : vector<32x1xf32>
    %126 = vector.broadcast %122 : vector<32x1xf32> to vector<32x16xf32>
    %127 = arith.mulf %107, %126 : vector<32x16xf32>
    %128 = vector.broadcast %125 : vector<32x1xf32> to vector<32x16xf32>
    %129 = arith.addf %127, %128 : vector<32x16xf32>
    %c0_49 = arith.constant 0 : index
    %c512 = arith.constant 512 : index
    %130 = vector.load %arg3[%c0_49, %c512] : memref<32x768xf32, #tpu.memory_space<vmem>>, vector<2x32xf32>
    %cst_50 = arith.constant dense<0.000000e+00> : vector<2x16xf32>
    %131 = tpu.matmul %130, %129, %cst_50 {dimension_numbers = #tpu.dot_dimension_numbers<[1], [0], [0], [1], [0, 0, 1, 1], [], []>} : vector<2x32xf32>, vector<32x16xf32>, vector<2x16xf32> -> vector<2x16xf32>
    %c0_51 = arith.constant 0 : index
    %c651 = arith.constant 651 : index
    %132 = vector.load %arg3[%c0_51, %c651] : memref<32x768xf32, #tpu.memory_space<vmem>>, vector<2x1xf32>
    %133 = vector.broadcast %132 : vector<2x1xf32> to vector<2x16xf32>
    %134 = arith.addf %131, %133 : vector<2x16xf32>
    %c0_52 = arith.constant 0 : index
    %c0_53 = arith.constant 0 : index
    %135 = vector.load %arg4[%c0_52, %c0_53] : memref<2x16xf32, #tpu.memory_space<vmem>>, vector<2x16xf32>
    tpu.vector_store %arg4[%c0_52, %c0_53], %134 {strides = array<i32>} : memref<2x16xf32, #tpu.memory_space<vmem>>, vector<2x16xf32>,
    return
  }
}

</mosaic_0001>

<llo_original>
// kernel: tmnet_forward.1
$region0: #{tmnet_forward.1}
  #allocation0 [shape = 'u32[]', space=smem, size = 0x4, offset = 0x4, fixed_abs, tag = 'smem constant byte address 0x4 - core index']
  #allocation1 [shape = 'u32[144,128]{1,0:T(1,128)}', space=vmem, size = 0x12000, scoped, tag = 'internal scratch']
  %s0 = inlined_call_operand.vmem [shape: f32[6,256], index: 0, kind: input, shape index: {}]
  %s1 = inlined_call_operand.hbm [shape: f32[256,1152], index: 1, kind: input, shape index: {}]
  %s2 = inlined_call_operand.hbm [shape: f32[64,1152], index: 2, kind: input, shape index: {}]
  %s3 = inlined_call_operand.hbm [shape: f32[32,768], index: 3, kind: input, shape index: {}]
  %s4 = inlined_call_operand.vmem [shape: f32[2,16], index: 4, kind: output, shape index: {}]
  %s5 = sld [smem:[#allocation0]]
  $region38: #{tmnet_forward.1} parent=0
    _
  %s7 = ssub.s32 1, %s5
  %s8 = scalar_select 0, %s7, %s5
  $region1: #{tmnet_forward.1} parent=0
    #allocation2 [shape = 'u8[1179648]{0}', space=vmem, size = 0x120000, scoped, tag = 'input window, operand 1, single buffered']
    #allocation3 [shape = 's32[1]{0}', space=sflag, size = 0x4, scoped, tag = 'scoped memory for tmnet_forward.1']
    #allocation4 [shape = 'u8[294912]{0}', space=vmem, size = 0x48000, scoped, tag = 'input window, operand 2, single buffered']
    #allocation5 [shape = 's32[1]{0}', space=sflag, size = 0x4, scoped, tag = 'scoped memory for tmnet_forward.1']
    #allocation6 [shape = 'u8[98304]{0}', space=vmem, size = 0x18000, scoped, tag = 'input window, operand 3, single buffered']
    %9 = vsyncpa [#allocation3], 0
    %10 = vsyncpa [#allocation5], 0
    // Predicated region
    $region2: #{tmnet_forward.1} parent=1 // pred_check
      _
    $region3: #{tmnet_forward.1} parent=1 // pred_check_branch
      %12 = sbr.rel (0) target = $region5
    $region4: #{tmnet_forward.1} parent=1 // pred_region
      _
    $region5: #{tmnet_forward.1} parent=1 // pred_fallthru
      _
    // Predicated region
    $region6: #{tmnet_forward.1} parent=1 // pred_check
      _
    $region7: #{tmnet_forward.1} parent=1 // pred_check_branch
      %14 = sbr.rel (0) target = $region9
    $region8: #{tmnet_forward.1} parent=1 // pred_region
      %s16 = ssub.s32 36864, 36864
      %17 = vsyncadd [#allocation3], %s16
      %s18 = sshll.u32 [#allocation2], 4
      %s19 = int_to_ptr.vmem [resolvable:$true] %s18
      %24 = dma.hbm_to_vmem [thread:$0]  %s1, 36864, %s19, [#allocation3], 1152, 1152, 72
    $region9: #{tmnet_forward.1} parent=1 // pred_fallthru
      _
    // Predicated region
    $region10: #{tmnet_forward.1} parent=1 // pred_check
      _
    $region11: #{tmnet_forward.1} parent=1 // pred_check_branch
      %26 = sbr.rel (0) target = $region13
    $region12: #{tmnet_forward.1} parent=1 // pred_region
      %s28 = ssub.s32 9216, 9216
      %29 = vsyncadd [#allocation5], %s28
      %s30 = sshll.u32 [#allocation4], 4
      %s31 = int_to_ptr.vmem [resolvable:$true] %s30
      %36 = dma.hbm_to_vmem [thread:$0]  %s2, 9216, %s31, [#allocation5], 1152, 1152, 72
    $region13: #{tmnet_forward.1} parent=1 // pred_fallthru
      _
    // Predicated region
    $region14: #{tmnet_forward.1} parent=1 // pred_check
      _
    $region15: #{tmnet_forward.1} parent=1 // pred_check_branch
      %38 = sbr.rel (0) target = $region17
    $region16: #{tmnet_forward.1} parent=1 // pred_region
      %s40 = ssub.s32 3072, 3072
      %41 = vsyncadd [#allocation5], %s40
      %s42 = sshll.u32 [#allocation6], 4
      %s43 = int_to_ptr.vmem [resolvable:$true] %s42
      %48 = dma.hbm_to_vmem [thread:$0]  %s3, 3072, %s43, [#allocation5], 768, 768, 48
    $region17: #{tmnet_forward.1} parent=1 // pred_fallthru
      _
    // Predicated region
    $region18: #{tmnet_forward.1} parent=1 // pred_check
      _
    $region19: #{tmnet_forward.1} parent=1 // pred_check_branch
      %50 = sbr.rel (0) target = $region21
    $region20: #{tmnet_forward.1} parent=1 // pred_region
      %51 = dma.done [#allocation3], 36864
    $region21: #{tmnet_forward.1} parent=1 // pred_fallthru
      _
    // Predicated region
    $region22: #{tmnet_forward.1} parent=1 // pred_check
      _
    $region23: #{tmnet_forward.1} parent=1 // pred_check_branch
      %53 = sbr.rel (0) target = $region25
    $region24: #{tmnet_forward.1} parent=1 // pred_region
      %54 = dma.done [#allocation5], 9216
    $region25: #{tmnet_forward.1} parent=1 // pred_fallthru
      _
    // Predicated region
    $region26: #{tmnet_forward.1} parent=1 // pred_check
      _
    $region27: #{tmnet_forward.1} parent=1 // pred_check_branch
      %56 = sbr.rel (0) target = $region29
    $region28: #{tmnet_forward.1} parent=1 // pred_region
      %57 = dma.done [#allocation5], 3072
    $region29: #{tmnet_forward.1} parent=1 // pred_fallthru
      _
    %v58 = vld [vmem:[#allocation6] sm:$0xff]
    %v59 = vld [vmem:[%s0] sm:$0x3f]
    %v60 = vld [vmem:[%s0 + $0x8] sm:$0x3f]
    %v61 = vld [vmem:[#allocation6 + $0x28] sm:$0xff]
    %63 = vset.pattern.permute.xlu0 0
    %64 = vperm.xlu0 %63, %v61
    %v65 = vpop.permute.xlu0 %64
    %vm67 = vcmask 48128
    %v69 = vsel %vm67, %v58, 0
    %vm71 = vcmask 1045504
    %v73 = vsel %vm71, %v59, 0
    %v76 = vsel %vm71, %v60, 0
    %78 = vmatprep.subr.mxu0 0.0
    %79 = vmatpush1.msra.mxu0 0.0
    %80 = vmatprep.subr.mxu0 0.0
    %81 = vmatpush1.msra.mxu0 0.0
    %82 = vmatprep.subr.mxu0 0.0
    %83 = vmatpush1.msra.mxu0 0.0
    %84 = vmatprep.subr.mxu0 0.0
    %85 = vmatpush1.msra.mxu0 0.0
    %86 = vmatprep.subr.mxu0 0.0
    %87 = vmatpush1.msra.mxu0 0.0
    %88 = vmatprep.subr.mxu0 0.0
    %89 = vmatpush1.msra.mxu0 0.0
    %90 = vmatprep.subr.mxu0 0.0
    %91 = vmatpush1.msra.mxu0 0.0
    %92 = vmatprep.subr.mxu0 0.0
    %93 = vmatpush1.msra.mxu0 0.0
    %94 = vmatprep.subr.mxu0 0.0
    %95 = vmatpush1.msra.mxu0 0.0
    %96 = vmatprep.subr.mxu0 0.0
    %97 = vmatpush1.msra.mxu0 0.0
    %98 = vmatprep.subr.mxu0 0.0
    %99 = vmatpush1.msra.mxu0 0.0
    %100 = vmatprep.subr.mxu0 0.0
    %101 = vmatpush1.msra.mxu0 0.0
    %102 = vmatprep.subr.mxu0 0.0
    %103 = vmatpush1.msra.mxu0 0.0
    %104 = vmatprep.subr.mxu0 0.0
    %105 = vmatpush1.msra.mxu0 0.0
    %106 = vmatprep.subr.mxu0 0.0
    %107 = vmatpush1.msra.mxu0 0.0
    %108 = vmatprep.subr.mxu0 %v76
    %109 = vmatpush1.msra.mxu0 %v73
    %110 = vmatprep.subr.mxu0 0.0
    %111 = vmatpush2.msra.mxu0 0.0
    %112 = vmatprep.subr.mxu0 0.0
    %113 = vmatpush2.msra.mxu0 0.0
    %114 = vmatprep.subr.mxu0 0.0
    %115 = vmatpush2.msra.mxu0 0.0
    %116 = vmatprep.subr.mxu0 0.0
    %117 = vmatpush2.msra.mxu0 0.0
    %118 = vmatprep.subr.mxu0 0.0
    %119 = vmatpush2.msra.mxu0 0.0
    %120 = vmatprep.subr.mxu0 0.0
    %121 = vmatpush2.msra.mxu0 0.0
    %122 = vmatprep.subr.mxu0 0.0
    %123 = vmatpush2.msra.mxu0 0.0
    %124 = vmatprep.subr.mxu0 0.0
    %125 = vmatpush2.msra.mxu0 0.0
    %126 = vmatprep.subr.mxu0 0.0
    %127 = vmatpush2.msra.mxu0 0.0
    %128 = vmatprep.subr.mxu0 0.0
    %129 = vmatpush2.msra.mxu0 0.0
    %130 = vmatprep.subr.mxu0 0.0
    %131 = vmatpush2.msra.mxu0 0.0
    %132 = vmatprep.subr.mxu0 0.0
    %133 = vmatpush2.msra.mxu0 0.0
    %134 = vmatprep.subr.mxu0 0.0
    %135 = vmatpush2.msra.mxu0 0.0
    %136 = vmatprep.subr.mxu0 0.0
    %137 = vmatpush2.msra.mxu0 0.0
    %138 = vmatprep.subr.mxu0 0.0
    %139 = vmatpush2.msra.mxu0 0.0
    %140 = vmatprep.subr.mxu0 0.0
    %141 = vmatpush2.msra.mxu0 0.0
    %142 = vmatprep.mubr.f32.mxu0 0.0
    %143 = vmatmul.mubr.f32.gmra.mxu0 %v69
    %v144 = vpop.f32.mrf.mxu0
    %v145 = vadd.f32 %v65, %v144
    %v146 = vpop.f32.mrf.mxu0
    %v147 = vadd.f32 %v65, %v146
    %148 = vdwg.mxu0
    %v149 = vadd.f32 %v145, %v147
    %150 = vadd.xlane.f32.xlu0 %v149
    %v151 = vpop.xlane.xlu0 %150
    %v152 = vmul.f32 %v145, %v145
    %v153 = vmul.f32 %v147, %v147
    %v154 = vadd.f32 %v152, %v153
    %155 = vadd.xlane.f32.xlu0 %v154
    %v156 = vpop.xlane.xlu0 %155
    %157 = vrot.lane.b32.xlu0 %v61, 112
    %v158 = vpop.permute.xlu0 %157
    %vm159 = vcmask 64512
    %v160 = vsel %vm159, %v158, 0
    %162 = vmatprep.subr.mxu0 0.0
    %163 = vmatpush1.msra.mxu0 0.0
    %164 = vmatprep.subr.mxu0 0.0
    %165 = vmatpush1.msra.mxu0 0.0
    %166 = vmatprep.subr.mxu0 0.0
    %167 = vmatpush1.msra.mxu0 0.0
    %168 = vmatprep.subr.mxu0 0.0
    %169 = vmatpush1.msra.mxu0 0.0
    %170 = vmatprep.subr.mxu0 0.0
    %171 = vmatpush1.msra.mxu0 0.0
    %172 = vmatprep.subr.mxu0 0.0
    %173 = vmatpush1.msra.mxu0 0.0
    %174 = vmatprep.subr.mxu0 0.0
    %175 = vmatpush1.msra.mxu0 0.0
    %176 = vmatprep.subr.mxu0 0.0
    %177 = vmatpush1.msra.mxu0 0.0
    %178 = vmatprep.subr.mxu0 0.0
    %179 = vmatpush1.msra.mxu0 0.0
    %180 = vmatprep.subr.mxu0 0.0
    %181 = vmatpush1.msra.mxu0 0.0
    %182 = vmatprep.subr.mxu0 0.0
    %183 = vmatpush1.msra.mxu0 0.0
    %184 = vmatprep.subr.mxu0 0.0
    %185 = vmatpush1.msra.mxu0 0.0
    %186 = vmatprep.subr.mxu0 0.0
    %187 = vmatpush1.msra.mxu0 0.0
    %188 = vmatprep.subr.mxu0 0.0
    %189 = vmatpush1.msra.mxu0 0.0
    %190 = vmatprep.subr.mxu0 0.0
    %191 = vmatpush1.msra.mxu0 0.0
    %192 = vmatprep.subr.mxu0 0.0
    %193 = vmatpush1.msra.mxu0 %v151
    %194 = vmatprep.subr.mxu0 0.0
    %195 = vmatpush2.msra.mxu0 0.0
    %196 = vmatprep.subr.mxu0 0.0
    %197 = vmatpush2.msra.mxu0 0.0
    %198 = vmatprep.subr.mxu0 0.0
    %199 = vmatpush2.msra.mxu0 0.0
    %200 = vmatprep.subr.mxu0 0.0
    %201 = vmatpush2.msra.mxu0 0.0
    %202 = vmatprep.subr.mxu0 0.0
    %203 = vmatpush2.msra.mxu0 0.0
    %204 = vmatprep.subr.mxu0 0.0
    %205 = vmatpush2.msra.mxu0 0.0
    %206 = vmatprep.subr.mxu0 0.0
    %207 = vmatpush2.msra.mxu0 0.0
    %208 = vmatprep.subr.mxu0 0.0
    %209 = vmatpush2.msra.mxu0 0.0
    %210 = vmatprep.subr.mxu0 0.0
    %211 = vmatpush2.msra.mxu0 0.0
    %212 = vmatprep.subr.mxu0 0.0
    %213 = vmatpush2.msra.mxu0 0.0
    %214 = vmatprep.subr.mxu0 0.0
    %215 = vmatpush2.msra.mxu0 0.0
    %216 = vmatprep.subr.mxu0 0.0
    %217 = vmatpush2.msra.mxu0 0.0
    %218 = vmatprep.subr.mxu0 0.0
    %219 = vmatpush2.msra.mxu0 0.0
    %220 = vmatprep.subr.mxu0 0.0
    %221 = vmatpush2.msra.mxu0 0.0
    %222 = vmatprep.subr.mxu0 0.0
    %223 = vmatpush2.msra.mxu0 0.0
    %224 = vmatprep.subr.mxu0 0.0
    %225 = vmatpush2.msra.mxu0 0.0
    %226 = vmatprep.mubr.f32.mxu0 0.0
    %227 = vmatmul.mubr.f32.gmra.mxu0 %v160
    %v228 = vpop.f32.mrf.mxu0
    %v229 = vadd.f32 0.0, %v228
    %v230 = vpop.f32.mrf.mxu0
    %231 = vdwg.mxu0
    %232 = vmatprep.subr.mxu0 0.0
    %233 = vmatpush1.msra.mxu0 0.0
    %234 = vmatprep.subr.mxu0 0.0
    %235 = vmatpush1.msra.mxu0 0.0
    %236 = vmatprep.subr.mxu0 0.0
    %237 = vmatpush1.msra.mxu0 0.0
    %238 = vmatprep.subr.mxu0 0.0
    %239 = vmatpush1.msra.mxu0 0.0
    %240 = vmatprep.subr.mxu0 0.0
    %241 = vmatpush1.msra.mxu0 0.0
    %242 = vmatprep.subr.mxu0 0.0
    %243 = vmatpush1.msra.mxu0 0.0
    %244 = vmatprep.subr.mxu0 0.0
    %245 = vmatpush1.msra.mxu0 0.0
    %246 = vmatprep.subr.mxu0 0.0
    %247 = vmatpush1.msra.mxu0 0.0
    %248 = vmatprep.subr.mxu0 0.0
    %249 = vmatpush1.msra.mxu0 0.0
    %250 = vmatprep.subr.mxu0 0.0
    %251 = vmatpush1.msra.mxu0 0.0
    %252 = vmatprep.subr.mxu0 0.0
    %253 = vmatpush1.msra.mxu0 0.0
    %254 = vmatprep.subr.mxu0 0.0
    %255 = vmatpush1.msra.mxu0 0.0
    %256 = vmatprep.subr.mxu0 0.0
    %257 = vmatpush1.msra.mxu0 0.0
    %258 = vmatprep.subr.mxu0 0.0
    %259 = vmatpush1.msra.mxu0 0.0
    %260 = vmatprep.subr.mxu0 0.0
    %261 = vmatpush1.msra.mxu0 0.0
    %262 = vmatprep.subr.mxu0 0.0
    %263 = vmatpush1.msra.mxu0 %v156
    %264 = vmatprep.subr.mxu0 0.0
    %265 = vmatpush2.msra.mxu0 0.0
    %266 = vmatprep.subr.mxu0 0.0
    %267 = vmatpush2.msra.mxu0 0.0
    %268 = vmatprep.subr.mxu0 0.0
    %269 = vmatpush2.msra.mxu0 0.0
    %270 = vmatprep.subr.mxu0 0.0
    %271 = vmatpush2.msra.mxu0 0.0
    %272 = vmatprep.subr.mxu0 0.0
    %273 = vmatpush2.msra.mxu0 0.0
    %274 = vmatprep.subr.mxu0 0.0
    %275 = vmatpush2.msra.mxu0 0.0
    %276 = vmatprep.subr.mxu0 0.0
    %277 = vmatpush2.msra.mxu0 0.0
    %278 = vmatprep.subr.mxu0 0.0
    %279 = vmatpush2.msra.mxu0 0.0
    %280 = vmatprep.subr.mxu0 0.0
    %281 = vmatpush2.msra.mxu0 0.0
    %282 = vmatprep.subr.mxu0 0.0
    %283 = vmatpush2.msra.mxu0 0.0
    %284 = vmatprep.subr.mxu0 0.0
    %285 = vmatpush2.msra.mxu0 0.0
    %286 = vmatprep.subr.mxu0 0.0
    %287 = vmatpush2.msra.mxu0 0.0
    %288 = vmatprep.subr.mxu0 0.0
    %289 = vmatpush2.msra.mxu0 0.0
    %290 = vmatprep.subr.mxu0 0.0
    %291 = vmatpush2.msra.mxu0 0.0
    %292 = vmatprep.subr.mxu0 0.0
    %293 = vmatpush2.msra.mxu0 0.0
    %294 = vmatprep.subr.mxu0 0.0
    %295 = vmatpush2.msra.mxu0 0.0
    %296 = vmatprep.mubr.f32.mxu0 0.0
    %297 = vmatmul.mubr.f32.gmra.mxu0 %v160
    %v298 = vpop.f32.mrf.mxu0
    %v299 = vadd.f32 0.0, %v298
    %v300 = vpop.f32.mrf.mxu0
    %301 = vdwg.mxu0
    %v302 = vmul.f32 %v229, %v229
    %v303 = vsub.f32 %v299, %v302
    %v304 = vadd.f32 %v303, 1e-05
    %v305 = vrsqrt.pop %v304
    %307 = vrot.lane.b32.xlu0 %v305, 1
    %v308 = vpop.permute.xlu0 %307
    %v310 = vmul.f32 %v61, %v308
    %312 = vrot.lane.b32.xlu0 %v310, 127
    %v313 = vpop.permute.xlu0 %312
    %v315 = vmul.f32 %v229, %v313
    %317 = vrot.lane.b32.xlu0 %v315, 2
    %v318 = vpop.permute.xlu0 %317
    %v320 = vsub.f32 %v61, %v318
    %321 = vset.pattern.permute.xlu0 1
    %322 = vperm.xlu0 %321, %v310
    %v323 = vpop.permute.xlu0 %322
    %v325 = vmul.f32 %v145, %v323
    %v326 = vmul.f32 %v147, %v323
    %328 = vset.pattern.permute.xlu0 2
    %329 = vperm.xlu0 %328, %v320
    %v330 = vpop.permute.xlu0 %329
    %v332 = vadd.f32 %v325, %v330
    %v333 = vadd.f32 %v326, %v330
    %v334 = vld [vmem:[#allocation2] sm:$0xff]
    %v335 = vld [vmem:[#allocation2 + $0x8] sm:$0xff]
    %v336 = vld [vmem:[#allocation2 + $0x10] sm:$0xff]
    %v337 = vld [vmem:[#allocation2 + $0x18] sm:$0xff]
    %v338 = vld [vmem:[#allocation2 + $0x20] sm:$0xff]
    %v339 = vld [vmem:[#allocation2 + $0x28] sm:$0xff]
    %v340 = vld [vmem:[#allocation2 + $0x30] sm:$0xff]
    %v341 = vld [vmem:[#allocation2 + $0x38] sm:$0xff]
    %v342 = vld [vmem:[#allocation2 + $0x40] sm:$0xff]
    %v343 = vld [vmem:[#allocation2 + $0x48] sm:$0xff]
    %v344 = vld [vmem:[#allocation2 + $0x50] sm:$0xff]
    %v345 = vld [vmem:[#allocation2 + $0x58] sm:$0xff]
    %v346 = vld [vmem:[#allocation2 + $0x60] sm:$0xff]
    %v347 = vld [vmem:[#allocation2 + $0x68] sm:$0xff]
    %v348 = vld [vmem:[#allocation2 + $0x70] sm:$0xff]
    %v349 = vld [vmem:[#allocation2 + $0x78] sm:$0xff]
    %v350 = vld [vmem:[#allocation2 + $0x80] sm:$0xff]
    %v351 = vld [vmem:[#allocation2 + $0x88] sm:$0xff]
    %v352 = vld [vmem:[#allocation2 + $0x90] sm:$0xff]
    %v353 = vld [vmem:[#allocation2 + $0x98] sm:$0xff]
    %v354 = vld [vmem:[#allocation2 + $0xa0] sm:$0xff]
    %v355 = vld [vmem:[#allocation2 + $0xa8] sm:$0xff]
    %v356 = vld [vmem:[#allocation2 + $0xb0] sm:$0xff]
    %v357 = vld [vmem:[#allocation2 + $0xb8] sm:$0xff]
    %v358 = vld [vmem:[#allocation2 + $0xc0] sm:$0xff]
    %v359 = vld [vmem:[#allocation2 + $0xc8] sm:$0xff]
    %v360 = vld [vmem:[#allocation2 + $0xd0] sm:$0xff]
    %v361 = vld [vmem:[#allocation2 + $0xd8] sm:$0xff]
    %v362 = vld [vmem:[#allocation2 + $0xe0] sm:$0xff]
    %v363 = vld [vmem:[#allocation2 + $0xe8] sm:$0xff]
    %v364 = vld [vmem:[#allocation2 + $0xf0] sm:$0xff]
    %v365 = vld [vmem:[#allocation2 + $0xf8] sm:$0xff]
    %v366 = vld [vmem:[#allocation2 + $0x100] sm:$0xff]
    %v367 = vld [vmem:[#allocation2 + $0x108] sm:$0xff]
    %v368 = vld [vmem:[#allocation2 + $0x110] sm:$0xff]
    %v369 = vld [vmem:[#allocation2 + $0x118] sm:$0xff]
    %v370 = vld [vmem:[#allocation2 + $0x120] sm:$0xff]
    %v371 = vld [vmem:[#allocation2 + $0x128] sm:$0xff]
    %v372 = vld [vmem:[#allocation2 + $0x130] sm:$0xff]
    %v373 = vld [vmem:[#allocation2 + $0x138] sm:$0xff]
    %v374 = vld [vmem:[#allocation2 + $0x140] sm:$0xff]
    %v375 = vld [vmem:[#allocation2 + $0x148] sm:$0xff]
    %v376 = vld [vmem:[#allocation2 + $0x150] sm:$0xff]
    %v377 = vld [vmem:[#allocation2 + $0x158] sm:$0xff]
    %v378 = vld [vmem:[#allocation2 + $0x160] sm:$0xff]
    %v379 = vld [vmem:[#allocation2 + $0x168] sm:$0xff]
    %v380 = vld [vmem:[#allocation2 + $0x170] sm:$0xff]
    %v381 = vld [vmem:[#allocation2 + $0x178] sm:$0xff]
    %v382 = vld [vmem:[#allocation2 + $0x180] sm:$0xff]
    %v383 = vld [vmem:[#allocation2 + $0x188] sm:$0xff]
    %v384 = vld [vmem:[#allocation2 + $0x190] sm:$0xff]
    %v385 = vld [vmem:[#allocation2 + $0x198] sm:$0xff]
    %v386 = vld [vmem:[#allocation2 + $0x1a0] sm:$0xff]
    %v387 = vld [vmem:[#allocation2 + $0x1a8] sm:$0xff]
    %v388 = vld [vmem:[#allocation2 + $0x1b0] sm:$0xff]
    %v389 = vld [vmem:[#allocation2 + $0x1b8] sm:$0xff]
    %v390 = vld [vmem:[#allocation2 + $0x1c0] sm:$0xff]
    %v391 = vld [vmem:[#allocation2 + $0x1c8] sm:$0xff]
    %v392 = vld [vmem:[#allocation2 + $0x1d0] sm:$0xff]
    %v393 = vld [vmem:[#allocation2 + $0x1d8] sm:$0xff]
    %v394 = vld [vmem:[#allocation2 + $0x1e0] sm:$0xff]
    %v395 = vld [vmem:[#allocation2 + $0x1e8] sm:$0xff]
    %v396 = vld [vmem:[#allocation2 + $0x1f0] sm:$0xff]
    %v397 = vld [vmem:[#allocation2 + $0x1f8] sm:$0xff]
    %v398 = vld [vmem:[#allocation2 + $0x200] sm:$0xff]
    %v399 = vld [vmem:[#allocation2 + $0x208] sm:$0xff]
    %v400 = vld [vmem:[#allocation2 + $0x210] sm:$0xff]
    %v401 = vld [vmem:[#allocation2 + $0x218] sm:$0xff]
    %v402 = vld [vmem:[#allocation2 + $0x220] sm:$0xff]
    %v403 = vld [vmem:[#allocation2 + $0x228] sm:$0xff]
    %v404 = vld [vmem:[#allocation2 + $0x230] sm:$0xff]
    %v405 = vld [vmem:[#allocation2 + $0x238] sm:$0xff]
    %v406 = vld [vmem:[#allocation2 + $0x240] sm:$0xff]
    %v407 = vld [vmem:[#allocation2 + $0x248] sm:$0xff]
    %v408 = vld [vmem:[#allocation2 + $0x250] sm:$0xff]
    %v409 = vld [vmem:[#allocation2 + $0x258] sm:$0xff]
    %v410 = vld [vmem:[#allocation2 + $0x260] sm:$0xff]
    %v411 = vld [vmem:[#allocation2 + $0x268] sm:$0xff]
    %v412 = vld [vmem:[#allocation2 + $0x270] sm:$0xff]
    %v413 = vld [vmem:[#allocation2 + $0x278] sm:$0xff]
    %v414 = vld [vmem:[#allocation2 + $0x280] sm:$0xff]
    %v415 = vld [vmem:[#allocation2 + $0x288] sm:$0xff]
    %v416 = vld [vmem:[#allocation2 + $0x290] sm:$0xff]
    %v417 = vld [vmem:[#allocation2 + $0x298] sm:$0xff]
    %v418 = vld [vmem:[#allocation2 + $0x2a0] sm:$0xff]
    %v419 = vld [vmem:[#allocation2 + $0x2a8] sm:$0xff]
    %v420 = vld [vmem:[#allocation2 + $0x2b0] sm:$0xff]
    %v421 = vld [vmem:[#allocation2 + $0x2b8] sm:$0xff]
    %v422 = vld [vmem:[#allocation2 + $0x2c0] sm:$0xff]
    %v423 = vld [vmem:[#allocation2 + $0x2c8] sm:$0xff]
    %v424 = vld [vmem:[#allocation2 + $0x2d0] sm:$0xff]
    %v425 = vld [vmem:[#allocation2 + $0x2d8] sm:$0xff]
    %v426 = vld [vmem:[#allocation2 + $0x2e0] sm:$0xff]
    %v427 = vld [vmem:[#allocation2 + $0x2e8] sm:$0xff]
    %v428 = vld [vmem:[#allocation2 + $0x2f0] sm:$0xff]
    %v429 = vld [vmem:[#allocation2 + $0x2f8] sm:$0xff]
    %v430 = vld [vmem:[#allocation2 + $0x300] sm:$0xff]
    %v431 = vld [vmem:[#allocation2 + $0x308] sm:$0xff]
    %v432 = vld [vmem:[#allocation2 + $0x310] sm:$0xff]
    %v433 = vld [vmem:[#allocation2 + $0x318] sm:$0xff]
    %v434 = vld [vmem:[#allocation2 + $0x320] sm:$0xff]
    %v435 = vld [vmem:[#allocation2 + $0x328] sm:$0xff]
    %v436 = vld [vmem:[#allocation2 + $0x330] sm:$0xff]
    %v437 = vld [vmem:[#allocation2 + $0x338] sm:$0xff]
    %v438 = vld [vmem:[#allocation2 + $0x340] sm:$0xff]
    %v439 = vld [vmem:[#allocation2 + $0x348] sm:$0xff]
    %v440 = vld [vmem:[#allocation2 + $0x350] sm:$0xff]
    %v441 = vld [vmem:[#allocation2 + $0x358] sm:$0xff]
    %v442 = vld [vmem:[#allocation2 + $0x360] sm:$0xff]
    %v443 = vld [vmem:[#allocation2 + $0x368] sm:$0xff]
    %v444 = vld [vmem:[#allocation2 + $0x370] sm:$0xff]
    %v445 = vld [vmem:[#allocation2 + $0x378] sm:$0xff]
    %v446 = vld [vmem:[#allocation2 + $0x380] sm:$0xff]
    %v447 = vld [vmem:[#allocation2 + $0x388] sm:$0xff]
    %v448 = vld [vmem:[#allocation2 + $0x390] sm:$0xff]
    %v449 = vld [vmem:[#allocation2 + $0x398] sm:$0xff]
    %v450 = vld [vmem:[#allocation2 + $0x3a0] sm:$0xff]
    %v451 = vld [vmem:[#allocation2 + $0x3a8] sm:$0xff]
    %v452 = vld [vmem:[#allocation2 + $0x3b0] sm:$0xff]
    %v453 = vld [vmem:[#allocation2 + $0x3b8] sm:$0xff]
    %v454 = vld [vmem:[#allocation2 + $0x3c0] sm:$0xff]
    %v455 = vld [vmem:[#allocation2 + $0x3c8] sm:$0xff]
    %v456 = vld [vmem:[#allocation2 + $0x3d0] sm:$0xff]
    %v457 = vld [vmem:[#allocation2 + $0x3d8] sm:$0xff]
    %v458 = vld [vmem:[#allocation2 + $0x3e0] sm:$0xff]
    %v459 = vld [vmem:[#allocation2 + $0x3e8] sm:$0xff]
    %v460 = vld [vmem:[#allocation2 + $0x3f0] sm:$0xff]
    %v461 = vld [vmem:[#allocation2 + $0x3f8] sm:$0xff]
    %v462 = vld [vmem:[#allocation2 + $0x400] sm:$0xff]
    %v463 = vld [vmem:[#allocation2 + $0x408] sm:$0xff]
    %v464 = vld [vmem:[#allocation2 + $0x410] sm:$0xff]
    %v465 = vld [vmem:[#allocation2 + $0x418] sm:$0xff]
    %v466 = vld [vmem:[#allocation2 + $0x420] sm:$0xff]
    %v467 = vld [vmem:[#allocation2 + $0x428] sm:$0xff]
    %v468 = vld [vmem:[#allocation2 + $0x430] sm:$0xff]
    %v469 = vld [vmem:[#allocation2 + $0x438] sm:$0xff]
    %v470 = vld [vmem:[#allocation2 + $0x440] sm:$0xff]
    %v471 = vld [vmem:[#allocation2 + $0x448] sm:$0xff]
    %v472 = vld [vmem:[#allocation2 + $0x450] sm:$0xff]
    %v473 = vld [vmem:[#allocation2 + $0x458] sm:$0xff]
    %v474 = vld [vmem:[#allocation2 + $0x460] sm:$0xff]
    %v475 = vld [vmem:[#allocation2 + $0x468] sm:$0xff]
    %v476 = vld [vmem:[#allocation2 + $0x470] sm:$0xff]
    %v477 = vld [vmem:[#allocation2 + $0x478] sm:$0xff]
    %v478 = vld [vmem:[#allocation2 + $0x480] sm:$0xff]
    %v479 = vld [vmem:[#allocation2 + $0x488] sm:$0xff]
    %v480 = vld [vmem:[#allocation2 + $0x490] sm:$0xff]
    %v481 = vld [vmem:[#allocation2 + $0x498] sm:$0xff]
    %v482 = vld [vmem:[#allocation2 + $0x4a0] sm:$0xff]
    %v483 = vld [vmem:[#allocation2 + $0x4a8] sm:$0xff]
    %v484 = vld [vmem:[#allocation2 + $0x4b0] sm:$0xff]
    %v485 = vld [vmem:[#allocation2 + $0x4b8] sm:$0xff]
    %v486 = vld [vmem:[#allocation2 + $0x4c0] sm:$0xff]
    %v487 = vld [vmem:[#allocation2 + $0x4c8] sm:$0xff]
    %v488 = vld [vmem:[#allocation2 + $0x4d0] sm:$0xff]
    %v489 = vld [vmem:[#allocation2 + $0x4d8] sm:$0xff]
    %v490 = vld [vmem:[#allocation2 + $0x4e0] sm:$0xff]
    %v491 = vld [vmem:[#allocation2 + $0x4e8] sm:$0xff]
    %v492 = vld [vmem:[#allocation2 + $0x4f0] sm:$0xff]
    %v493 = vld [vmem:[#allocation2 + $0x4f8] sm:$0xff]
    %v494 = vld [vmem:[#allocation2 + $0x500] sm:$0xff]
    %v495 = vld [vmem:[#allocation2 + $0x508] sm:$0xff]
    %v496 = vld [vmem:[#allocation2 + $0x510] sm:$0xff]
    %v497 = vld [vmem:[#allocation2 + $0x518] sm:$0xff]
    %v498 = vld [vmem:[#allocation2 + $0x520] sm:$0xff]
    %v499 = vld [vmem:[#allocation2 + $0x528] sm:$0xff]
    %v500 = vld [vmem:[#allocation2 + $0x530] sm:$0xff]
    %v501 = vld [vmem:[#allocation2 + $0x538] sm:$0xff]
    %v502 = vld [vmem:[#allocation2 + $0x540] sm:$0xff]
    %v503 = vld [vmem:[#allocation2 + $0x548] sm:$0xff]
    %v504 = vld [vmem:[#allocation2 + $0x550] sm:$0xff]
    %v505 = vld [vmem:[#allocation2 + $0x558] sm:$0xff]
    %v506 = vld [vmem:[#allocation2 + $0x560] sm:$0xff]
    %v507 = vld [vmem:[#allocation2 + $0x568] sm:$0xff]
    %v508 = vld [vmem:[#allocation2 + $0x570] sm:$0xff]
    %v509 = vld [vmem:[#allocation2 + $0x578] sm:$0xff]
    %v510 = vld [vmem:[#allocation2 + $0x580] sm:$0xff]
    %v511 = vld [vmem:[#allocation2 + $0x588] sm:$0xff]
    %v512 = vld [vmem:[#allocation2 + $0x590] sm:$0xff]
    %v513 = vld [vmem:[#allocation2 + $0x598] sm:$0xff]
    %v514 = vld [vmem:[#allocation2 + $0x5a0] sm:$0xff]
    %v515 = vld [vmem:[#allocation2 + $0x5a8] sm:$0xff]
    %v516 = vld [vmem:[#allocation2 + $0x5b0] sm:$0xff]
    %v517 = vld [vmem:[#allocation2 + $0x5b8] sm:$0xff]
    %v518 = vld [vmem:[#allocation2 + $0x5c0] sm:$0xff]
    %v519 = vld [vmem:[#allocation2 + $0x5c8] sm:$0xff]
    %v520 = vld [vmem:[#allocation2 + $0x5d0] sm:$0xff]
    %v521 = vld [vmem:[#allocation2 + $0x5d8] sm:$0xff]
    %v522 = vld [vmem:[#allocation2 + $0x5e0] sm:$0xff]
    %v523 = vld [vmem:[#allocation2 + $0x5e8] sm:$0xff]
    %v524 = vld [vmem:[#allocation2 + $0x5f0] sm:$0xff]
    %v525 = vld [vmem:[#allocation2 + $0x5f8] sm:$0xff]
    %v526 = vld [vmem:[#allocation2 + $0x600] sm:$0xff]
    %v527 = vld [vmem:[#allocation2 + $0x608] sm:$0xff]
    %v528 = vld [vmem:[#allocation2 + $0x610] sm:$0xff]
    %v529 = vld [vmem:[#allocation2 + $0x618] sm:$0xff]
    %v530 = vld [vmem:[#allocation2 + $0x620] sm:$0xff]
    %v531 = vld [vmem:[#allocation2 + $0x628] sm:$0xff]
    %v532 = vld [vmem:[#allocation2 + $0x630] sm:$0xff]
    %v533 = vld [vmem:[#allocation2 + $0x638] sm:$0xff]
    %v534 = vld [vmem:[#allocation2 + $0x640] sm:$0xff]
    %v535 = vld [vmem:[#allocation2 + $0x648] sm:$0xff]
    %v536 = vld [vmem:[#allocation2 + $0x650] sm:$0xff]
    %v537 = vld [vmem:[#allocation2 + $0x658] sm:$0xff]
    %v538 = vld [vmem:[#allocation2 + $0x660] sm:$0xff]
    %v539 = vld [vmem:[#allocation2 + $0x668] sm:$0xff]
    %v540 = vld [vmem:[#allocation2 + $0x670] sm:$0xff]
    %v541 = vld [vmem:[#allocation2 + $0x678] sm:$0xff]
    %v542 = vld [vmem:[#allocation2 + $0x680] sm:$0xff]
    %v543 = vld [vmem:[#allocation2 + $0x688] sm:$0xff]
    %v544 = vld [vmem:[#allocation2 + $0x690] sm:$0xff]
    %v545 = vld [vmem:[#allocation2 + $0x698] sm:$0xff]
    %v546 = vld [vmem:[#allocation2 + $0x6a0] sm:$0xff]
    %v547 = vld [vmem:[#allocation2 + $0x6a8] sm:$0xff]
    %v548 = vld [vmem:[#allocation2 + $0x6b0] sm:$0xff]
    %v549 = vld [vmem:[#allocation2 + $0x6b8] sm:$0xff]
    %v550 = vld [vmem:[#allocation2 + $0x6c0] sm:$0xff]
    %v551 = vld [vmem:[#allocation2 + $0x6c8] sm:$0xff]
    %v552 = vld [vmem:[#allocation2 + $0x6d0] sm:$0xff]
    %v553 = vld [vmem:[#allocation2 + $0x6d8] sm:$0xff]
    %v554 = vld [vmem:[#allocation2 + $0x6e0] sm:$0xff]
    %v555 = vld [vmem:[#allocation2 + $0x6e8] sm:$0xff]
    %v556 = vld [vmem:[#allocation2 + $0x6f0] sm:$0xff]
    %v557 = vld [vmem:[#allocation2 + $0x6f8] sm:$0xff]
    %v558 = vld [vmem:[#allocation2 + $0x700] sm:$0xff]
    %v559 = vld [vmem:[#allocation2 + $0x708] sm:$0xff]
    %v560 = vld [vmem:[#allocation2 + $0x710] sm:$0xff]
    %v561 = vld [vmem:[#allocation2 + $0x718] sm:$0xff]
    %v562 = vld [vmem:[#allocation2 + $0x720] sm:$0xff]
    %v563 = vld [vmem:[#allocation2 + $0x728] sm:$0xff]
    %v564 = vld [vmem:[#allocation2 + $0x730] sm:$0xff]
    %v565 = vld [vmem:[#allocation2 + $0x738] sm:$0xff]
    %v566 = vld [vmem:[#allocation2 + $0x740] sm:$0xff]
    %v567 = vld [vmem:[#allocation2 + $0x748] sm:$0xff]
    %v568 = vld [vmem:[#allocation2 + $0x750] sm:$0xff]
    %v569 = vld [vmem:[#allocation2 + $0x758] sm:$0xff]
    %v570 = vld [vmem:[#allocation2 + $0x760] sm:$0xff]
    %v571 = vld [vmem:[#allocation2 + $0x768] sm:$0xff]
    %v572 = vld [vmem:[#allocation2 + $0x770] sm:$0xff]
    %v573 = vld [vmem:[#allocation2 + $0x778] sm:$0xff]
    %v574 = vld [vmem:[#allocation2 + $0x780] sm:$0xff]
    %v575 = vld [vmem:[#allocation2 + $0x788] sm:$0xff]
    %v576 = vld [vmem:[#allocation2 + $0x790] sm:$0xff]
    %v577 = vld [vmem:[#allocation2 + $0x798] sm:$0xff]
    %v578 = vld [vmem:[#allocation2 + $0x7a0] sm:$0xff]
    %v579 = vld [vmem:[#allocation2 + $0x7a8] sm:$0xff]
    %v580 = vld [vmem:[#allocation2 + $0x7b0] sm:$0xff]
    %v581 = vld [vmem:[#allocation2 + $0x7b8] sm:$0xff]
    %v582 = vld [vmem:[#allocation2 + $0x7c0] sm:$0xff]
    %v583 = vld [vmem:[#allocation2 + $0x7c8] sm:$0xff]
    %v584 = vld [vmem:[#allocation2 + $0x7d0] sm:$0xff]
    %v585 = vld [vmem:[#allocation2 + $0x7d8] sm:$0xff]
    %v586 = vld [vmem:[#allocation2 + $0x7e0] sm:$0xff]
    %v587 = vld [vmem:[#allocation2 + $0x7e8] sm:$0xff]
    %v588 = vld [vmem:[#allocation2 + $0x7f0] sm:$0xff]
    %v589 = vld [vmem:[#allocation2 + $0x7f8] sm:$0xff]
    %v590 = vld [vmem:[#allocation2 + $0x800] sm:$0xff]
    %v591 = vld [vmem:[#allocation2 + $0x808] sm:$0xff]
    %v592 = vld [vmem:[#allocation2 + $0x810] sm:$0xff]
    %v593 = vld [vmem:[#allocation2 + $0x818] sm:$0xff]
    %v594 = vld [vmem:[#allocation2 + $0x820] sm:$0xff]
    %v595 = vld [vmem:[#allocation2 + $0x828] sm:$0xff]
    %v596 = vld [vmem:[#allocation2 + $0x830] sm:$0xff]
    %v597 = vld [vmem:[#allocation2 + $0x838] sm:$0xff]
    %v598 = vld [vmem:[#allocation2 + $0x840] sm:$0xff]
    %v599 = vld [vmem:[#allocation2 + $0x848] sm:$0xff]
    %v600 = vld [vmem:[#allocation2 + $0x850] sm:$0xff]
    %v601 = vld [vmem:[#allocation2 + $0x858] sm:$0xff]
    %v602 = vld [vmem:[#allocation2 + $0x860] sm:$0xff]
    %v603 = vld [vmem:[#allocation2 + $0x868] sm:$0xff]
    %v604 = vld [vmem:[#allocation2 + $0x870] sm:$0xff]
    %v605 = vld [vmem:[#allocation2 + $0x878] sm:$0xff]
    %v606 = vld [vmem:[#allocation2 + $0x880] sm:$0xff]
    %v607 = vld [vmem:[#allocation2 + $0x888] sm:$0xff]
    %v608 = vld [vmem:[#allocation2 + $0x890] sm:$0xff]
    %v609 = vld [vmem:[#allocation2 + $0x898] sm:$0xff]
    %v610 = vld [vmem:[#allocation2 + $0x8a0] sm:$0xff]
    %v611 = vld [vmem:[#allocation2 + $0x8a8] sm:$0xff]
    %v612 = vld [vmem:[#allocation2 + $0x8b0] sm:$0xff]
    %v613 = vld [vmem:[#allocation2 + $0x8b8] sm:$0xff]
    %v614 = vld [vmem:[#allocation2 + $0x8c0] sm:$0xff]
    %v615 = vld [vmem:[#allocation2 + $0x8c8] sm:$0xff]
    %v616 = vld [vmem:[#allocation2 + $0x8d0] sm:$0xff]
    %v617 = vld [vmem:[#allocation2 + $0x8d8] sm:$0xff]
    %v618 = vld [vmem:[#allocation2 + $0x8e0] sm:$0xff]
    %v619 = vld [vmem:[#allocation2 + $0x8e8] sm:$0xff]
    %v620 = vld [vmem:[#allocation2 + $0x8f0] sm:$0xff]
    %v621 = vld [vmem:[#allocation2 + $0x8f8] sm:$0xff]
    %622 = vmatprep.subr.mxu0 %v470
    %623 = vmatpush1.msra.mxu0 %v469
    %624 = vmatprep.subr.mxu0 %v461
    %625 = vmatpush1.msra.mxu0 %v460
    %626 = vmatprep.subr.mxu0 %v452
    %627 = vmatpush1.msra.mxu0 %v451
    %628 = vmatprep.subr.mxu0 %v443
    %629 = vmatpush1.msra.mxu0 %v442
    %630 = vmatprep.subr.mxu0 %v434
    %631 = vmatpush1.msra.mxu0 %v433
    %632 = vmatprep.subr.mxu0 %v425
    %633 = vmatpush1.msra.mxu0 %v424
    %634 = vmatprep.subr.mxu0 %v416
    %635 = vmatpush1.msra.mxu0 %v415
    %636 = vmatprep.subr.mxu0 %v407
    %637 = vmatpush1.msra.mxu0 %v406
    %638 = vmatprep.subr.mxu0 %v398
    %639 = vmatpush1.msra.mxu0 %v397
    %640 = vmatprep.subr.mxu0 %v389
    %641 = vmatpush1.msra.mxu0 %v388
    %642 = vmatprep.subr.mxu0 %v380
    %643 = vmatpush1.msra.mxu0 %v379
    %644 = vmatprep.subr.mxu0 %v371
    %645 = vmatpush1.msra.mxu0 %v370
    %646 = vmatprep.subr.mxu0 %v362
    %647 = vmatpush1.msra.mxu0 %v361
    %648 = vmatprep.subr.mxu0 %v353
    %649 = vmatpush1.msra.mxu0 %v352
    %650 = vmatprep.subr.mxu0 %v344
    %651 = vmatpush1.msra.mxu0 %v343
    %652 = vmatprep.subr.mxu0 %v335
    %653 = vmatpush1.msra.mxu0 %v334
    %654 = vmatprep.subr.mxu0 %v614
    %655 = vmatpush2.msra.mxu0 %v613
    %656 = vmatprep.subr.mxu0 %v605
    %657 = vmatpush2.msra.mxu0 %v604
    %658 = vmatprep.subr.mxu0 %v596
    %659 = vmatpush2.msra.mxu0 %v595
    %660 = vmatprep.subr.mxu0 %v587
    %661 = vmatpush2.msra.mxu0 %v586
    %662 = vmatprep.subr.mxu0 %v578
    %663 = vmatpush2.msra.mxu0 %v577
    %664 = vmatprep.subr.mxu0 %v569
    %665 = vmatpush2.msra.mxu0 %v568
    %666 = vmatprep.subr.mxu0 %v560
    %667 = vmatpush2.msra.mxu0 %v559
    %668 = vmatprep.subr.mxu0 %v551
    %669 = vmatpush2.msra.mxu0 %v550
    %670 = vmatprep.subr.mxu0 %v542
    %671 = vmatpush2.msra.mxu0 %v541
    %672 = vmatprep.subr.mxu0 %v533
    %673 = vmatpush2.msra.mxu0 %v532
    %674 = vmatprep.subr.mxu0 %v524
    %675 = vmatpush2.msra.mxu0 %v523
    %676 = vmatprep.subr.mxu0 %v515
    %677 = vmatpush2.msra.mxu0 %v514
    %678 = vmatprep.subr.mxu0 %v506
    %679 = vmatpush2.msra.mxu0 %v505
    %680 = vmatprep.subr.mxu0 %v497
    %681 = vmatpush2.msra.mxu0 %v496
    %682 = vmatprep.subr.mxu0 %v488
    %683 = vmatpush2.msra.mxu0 %v487
    %684 = vmatprep.subr.mxu0 %v479
    %685 = vmatpush2.msra.mxu0 %v478
    %686 = vmatprep.mubr.f32.mxu0 %v333
    %687 = vmatmul.mubr.f32.gmra.mxu0 %v332
    %v688 = vpop.f32.mrf.mxu0
    %v689 = vadd.f32 0.0, %v688
    %v690 = vpop.f32.mrf.mxu0
    %v691 = vadd.f32 0.0, %v690
    %692 = vdwg.mxu0
    %693 = vmatprep.subr.mxu0 %v472
    %694 = vmatpush1.msra.mxu0 %v471
    %695 = vmatprep.subr.mxu0 %v463
    %696 = vmatpush1.msra.mxu0 %v462
    %697 = vmatprep.subr.mxu0 %v454
    %698 = vmatpush1.msra.mxu0 %v453
    %699 = vmatprep.subr.mxu0 %v445
    %700 = vmatpush1.msra.mxu0 %v444
    %701 = vmatprep.subr.mxu0 %v436
    %702 = vmatpush1.msra.mxu0 %v435
    %703 = vmatprep.subr.mxu0 %v427
    %704 = vmatpush1.msra.mxu0 %v426
    %705 = vmatprep.subr.mxu0 %v418
    %706 = vmatpush1.msra.mxu0 %v417
    %707 = vmatprep.subr.mxu0 %v409
    %708 = vmatpush1.msra.mxu0 %v408
    %709 = vmatprep.subr.mxu0 %v400
    %710 = vmatpush1.msra.mxu0 %v399
    %711 = vmatprep.subr.mxu0 %v391
    %712 = vmatpush1.msra.mxu0 %v390
    %713 = vmatprep.subr.mxu0 %v382
    %714 = vmatpush1.msra.mxu0 %v381
    %715 = vmatprep.subr.mxu0 %v373
    %716 = vmatpush1.msra.mxu0 %v372
    %717 = vmatprep.subr.mxu0 %v364
    %718 = vmatpush1.msra.mxu0 %v363
    %719 = vmatprep.subr.mxu0 %v355
    %720 = vmatpush1.msra.mxu0 %v354
    %721 = vmatprep.subr.mxu0 %v346
    %722 = vmatpush1.msra.mxu0 %v345
    %723 = vmatprep.subr.mxu0 %v337
    %724 = vmatpush1.msra.mxu0 %v336
    %725 = vmatprep.subr.mxu0 %v616
    %726 = vmatpush2.msra.mxu0 %v615
    %727 = vmatprep.subr.mxu0 %v607
    %728 = vmatpush2.msra.mxu0 %v606
    %729 = vmatprep.subr.mxu0 %v598
    %730 = vmatpush2.msra.mxu0 %v597
    %731 = vmatprep.subr.mxu0 %v589
    %732 = vmatpush2.msra.mxu0 %v588
    %733 = vmatprep.subr.mxu0 %v580
    %734 = vmatpush2.msra.mxu0 %v579
    %735 = vmatprep.subr.mxu0 %v571
    %736 = vmatpush2.msra.mxu0 %v570
    %737 = vmatprep.subr.mxu0 %v562
    %738 = vmatpush2.msra.mxu0 %v561
    %739 = vmatprep.subr.mxu0 %v553
    %740 = vmatpush2.msra.mxu0 %v552
    %741 = vmatprep.subr.mxu0 %v544
    %742 = vmatpush2.msra.mxu0 %v543
    %743 = vmatprep.subr.mxu0 %v535
    %744 = vmatpush2.msra.mxu0 %v534
    %745 = vmatprep.subr.mxu0 %v526
    %746 = vmatpush2.msra.mxu0 %v525
    %747 = vmatprep.subr.mxu0 %v517
    %748 = vmatpush2.msra.mxu0 %v516
    %749 = vmatprep.subr.mxu0 %v508
    %750 = vmatpush2.msra.mxu0 %v507
    %751 = vmatprep.subr.mxu0 %v499
    %752 = vmatpush2.msra.mxu0 %v498
    %753 = vmatprep.subr.mxu0 %v490
    %754 = vmatpush2.msra.mxu0 %v489
    %755 = vmatprep.subr.mxu0 %v481
    %756 = vmatpush2.msra.mxu0 %v480
    %757 = vmatprep.mubr.f32.mxu0 %v333
    %758 = vmatmul.mubr.f32.gmra.mxu0 %v332
    %v759 = vpop.f32.mrf.mxu0
    %v760 = vadd.f32 0.0, %v759
    %v761 = vpop.f32.mrf.mxu0
    %v762 = vadd.f32 0.0, %v761
    %763 = vdwg.mxu0
    %764 = vmatprep.subr.mxu0 %v474
    %765 = vmatpush1.msra.mxu0 %v473
    %766 = vmatprep.subr.mxu0 %v465
    %767 = vmatpush1.msra.mxu0 %v464
    %768 = vmatprep.subr.mxu0 %v456
    %769 = vmatpush1.msra.mxu0 %v455
    %770 = vmatprep.subr.mxu0 %v447
    %771 = vmatpush1.msra.mxu0 %v446
    %772 = vmatprep.subr.mxu0 %v438
    %773 = vmatpush1.msra.mxu0 %v437
    %774 = vmatprep.subr.mxu0 %v429
    %775 = vmatpush1.msra.mxu0 %v428
    %776 = vmatprep.subr.mxu0 %v420
    %777 = vmatpush1.msra.mxu0 %v419
    %778 = vmatprep.subr.mxu0 %v411
    %779 = vmatpush1.msra.mxu0 %v410
    %780 = vmatprep.subr.mxu0 %v402
    %781 = vmatpush1.msra.mxu0 %v401
    %782 = vmatprep.subr.mxu0 %v393
    %783 = vmatpush1.msra.mxu0 %v392
    %784 = vmatprep.subr.mxu0 %v384
    %785 = vmatpush1.msra.mxu0 %v383
    %786 = vmatprep.subr.mxu0 %v375
    %787 = vmatpush1.msra.mxu0 %v374
    %788 = vmatprep.subr.mxu0 %v366
    %789 = vmatpush1.msra.mxu0 %v365
    %790 = vmatprep.subr.mxu0 %v357
    %791 = vmatpush1.msra.mxu0 %v356
    %792 = vmatprep.subr.mxu0 %v348
    %793 = vmatpush1.msra.mxu0 %v347
    %794 = vmatprep.subr.mxu0 %v339
    %795 = vmatpush1.msra.mxu0 %v338
    %796 = vmatprep.subr.mxu0 %v618
    %797 = vmatpush2.msra.mxu0 %v617
    %798 = vmatprep.subr.mxu0 %v609
    %799 = vmatpush2.msra.mxu0 %v608
    %800 = vmatprep.subr.mxu0 %v600
    %801 = vmatpush2.msra.mxu0 %v599
    %802 = vmatprep.subr.mxu0 %v591
    %803 = vmatpush2.msra.mxu0 %v590
    %804 = vmatprep.subr.mxu0 %v582
    %805 = vmatpush2.msra.mxu0 %v581
    %806 = vmatprep.subr.mxu0 %v573
    %807 = vmatpush2.msra.mxu0 %v572
    %808 = vmatprep.subr.mxu0 %v564
    %809 = vmatpush2.msra.mxu0 %v563
    %810 = vmatprep.subr.mxu0 %v555
    %811 = vmatpush2.msra.mxu0 %v554
    %812 = vmatprep.subr.mxu0 %v546
    %813 = vmatpush2.msra.mxu0 %v545
    %814 = vmatprep.subr.mxu0 %v537
    %815 = vmatpush2.msra.mxu0 %v536
    %816 = vmatprep.subr.mxu0 %v528
    %817 = vmatpush2.msra.mxu0 %v527
    %818 = vmatprep.subr.mxu0 %v519
    %819 = vmatpush2.msra.mxu0 %v518
    %820 = vmatprep.subr.mxu0 %v510
    %821 = vmatpush2.msra.mxu0 %v509
    %822 = vmatprep.subr.mxu0 %v501
    %823 = vmatpush2.msra.mxu0 %v500
    %824 = vmatprep.subr.mxu0 %v492
    %825 = vmatpush2.msra.mxu0 %v491
    %826 = vmatprep.subr.mxu0 %v483
    %827 = vmatpush2.msra.mxu0 %v482
    %828 = vmatprep.mubr.f32.mxu0 %v333
    %829 = vmatmul.mubr.f32.gmra.mxu0 %v332
    %v830 = vpop.f32.mrf.mxu0
    %v831 = vadd.f32 0.0, %v830
    %v832 = vpop.f32.mrf.mxu0
    %v833 = vadd.f32 0.0, %v832
    %834 = vdwg.mxu0
    %835 = vmatprep.subr.mxu0 %v476
    %836 = vmatpush1.msra.mxu0 %v475
    %837 = vmatprep.subr.mxu0 %v467
    %838 = vmatpush1.msra.mxu0 %v466
    %839 = vmatprep.subr.mxu0 %v458
    %840 = vmatpush1.msra.mxu0 %v457
    %841 = vmatprep.subr.mxu0 %v449
    %842 = vmatpush1.msra.mxu0 %v448
    %843 = vmatprep.subr.mxu0 %v440
    %844 = vmatpush1.msra.mxu0 %v439
    %845 = vmatprep.subr.mxu0 %v431
    %846 = vmatpush1.msra.mxu0 %v430
    %847 = vmatprep.subr.mxu0 %v422
    %848 = vmatpush1.msra.mxu0 %v421
    %849 = vmatprep.subr.mxu0 %v413
    %850 = vmatpush1.msra.mxu0 %v412
    %851 = vmatprep.subr.mxu0 %v404
    %852 = vmatpush1.msra.mxu0 %v403
    %853 = vmatprep.subr.mxu0 %v395
    %854 = vmatpush1.msra.mxu0 %v394
    %855 = vmatprep.subr.mxu0 %v386
    %856 = vmatpush1.msra.mxu0 %v385
    %857 = vmatprep.subr.mxu0 %v377
    %858 = vmatpush1.msra.mxu0 %v376
    %859 = vmatprep.subr.mxu0 %v368
    %860 = vmatpush1.msra.mxu0 %v367
    %861 = vmatprep.subr.mxu0 %v359
    %862 = vmatpush1.msra.mxu0 %v358
    %863 = vmatprep.subr.mxu0 %v350
    %864 = vmatpush1.msra.mxu0 %v349
    %865 = vmatprep.subr.mxu0 %v341
    %866 = vmatpush1.msra.mxu0 %v340
    %867 = vmatprep.subr.mxu0 %v620
    %868 = vmatpush2.msra.mxu0 %v619
    %869 = vmatprep.subr.mxu0 %v611
    %870 = vmatpush2.msra.mxu0 %v610
    %871 = vmatprep.subr.mxu0 %v602
    %872 = vmatpush2.msra.mxu0 %v601
    %873 = vmatprep.subr.mxu0 %v593
    %874 = vmatpush2.msra.mxu0 %v592
    %875 = vmatprep.subr.mxu0 %v584
    %876 = vmatpush2.msra.mxu0 %v583
    %877 = vmatprep.subr.mxu0 %v575
    %878 = vmatpush2.msra.mxu0 %v574
    %879 = vmatprep.subr.mxu0 %v566
    %880 = vmatpush2.msra.mxu0 %v565
    %881 = vmatprep.subr.mxu0 %v557
    %882 = vmatpush2.msra.mxu0 %v556
    %883 = vmatprep.subr.mxu0 %v548
    %884 = vmatpush2.msra.mxu0 %v547
    %885 = vmatprep.subr.mxu0 %v539
    %886 = vmatpush2.msra.mxu0 %v538
    %887 = vmatprep.subr.mxu0 %v530
    %888 = vmatpush2.msra.mxu0 %v529
    %889 = vmatprep.subr.mxu0 %v521
    %890 = vmatpush2.msra.mxu0 %v520
    %891 = vmatprep.subr.mxu0 %v512
    %892 = vmatpush2.msra.mxu0 %v511
    %893 = vmatprep.subr.mxu0 %v503
    %894 = vmatpush2.msra.mxu0 %v502
    %895 = vmatprep.subr.mxu0 %v494
    %896 = vmatpush2.msra.mxu0 %v493
    %897 = vmatprep.subr.mxu0 %v485
    %898 = vmatpush2.msra.mxu0 %v484
    %899 = vmatprep.mubr.f32.mxu0 %v333
    %900 = vmatmul.mubr.f32.gmra.mxu0 %v332
    %v901 = vpop.f32.mrf.mxu0
    %v902 = vadd.f32 0.0, %v901
    %v903 = vpop.f32.mrf.mxu0
    %v904 = vadd.f32 0.0, %v903
    %905 = vdwg.mxu0
    %906 = vmatprep.subr.mxu0 0.0
    %907 = vmatpush1.msra.mxu0 %v477
    %908 = vmatprep.subr.mxu0 0.0
    %909 = vmatpush1.msra.mxu0 %v468
    %910 = vmatprep.subr.mxu0 0.0
    %911 = vmatpush1.msra.mxu0 %v459
    %912 = vmatprep.subr.mxu0 0.0
    %913 = vmatpush1.msra.mxu0 %v450
    %914 = vmatprep.subr.mxu0 0.0
    %915 = vmatpush1.msra.mxu0 %v441
    %916 = vmatprep.subr.mxu0 0.0
    %917 = vmatpush1.msra.mxu0 %v432
    %918 = vmatprep.subr.mxu0 0.0
    %919 = vmatpush1.msra.mxu0 %v423
    %920 = vmatprep.subr.mxu0 0.0
    %921 = vmatpush1.msra.mxu0 %v414
    %922 = vmatprep.subr.mxu0 0.0
    %923 = vmatpush1.msra.mxu0 %v405
    %924 = vmatprep.subr.mxu0 0.0
    %925 = vmatpush1.msra.mxu0 %v396
    %926 = vmatprep.subr.mxu0 0.0
    %927 = vmatpush1.msra.mxu0 %v387
    %928 = vmatprep.subr.mxu0 0.0
    %929 = vmatpush1.msra.mxu0 %v378
    %930 = vmatprep.subr.mxu0 0.0
    %931 = vmatpush1.msra.mxu0 %v369
    %932 = vmatprep.subr.mxu0 0.0
    %933 = vmatpush1.msra.mxu0 %v360
    %934 = vmatprep.subr.mxu0 0.0
    %935 = vmatpush1.msra.mxu0 %v351
    %936 = vmatprep.subr.mxu0 0.0
    %937 = vmatpush1.msra.mxu0 %v342
    %938 = vmatprep.subr.mxu0 0.0
    %939 = vmatpush2.msra.mxu0 %v621
    %940 = vmatprep.subr.mxu0 0.0
    %941 = vmatpush2.msra.mxu0 %v612
    %942 = vmatprep.subr.mxu0 0.0
    %943 = vmatpush2.msra.mxu0 %v603
    %944 = vmatprep.subr.mxu0 0.0
    %945 = vmatpush2.msra.mxu0 %v594
    %946 = vmatprep.subr.mxu0 0.0
    %947 = vmatpush2.msra.mxu0 %v585
    %948 = vmatprep.subr.mxu0 0.0
    %949 = vmatpush2.msra.mxu0 %v576
    %950 = vmatprep.subr.mxu0 0.0
    %951 = vmatpush2.msra.mxu0 %v567
    %952 = vmatprep.subr.mxu0 0.0
    %953 = vmatpush2.msra.mxu0 %v558
    %954 = vmatprep.subr.mxu0 0.0
    %955 = vmatpush2.msra.mxu0 %v549
    %956 = vmatprep.subr.mxu0 0.0
    %957 = vmatpush2.msra.mxu0 %v540
    %958 = vmatprep.subr.mxu0 0.0
    %959 = vmatpush2.msra.mxu0 %v531
    %960 = vmatprep.subr.mxu0 0.0
    %961 = vmatpush2.msra.mxu0 %v522
    %962 = vmatprep.subr.mxu0 0.0
    %963 = vmatpush2.msra.mxu0 %v513
    %964 = vmatprep.subr.mxu0 0.0
    %965 = vmatpush2.msra.mxu0 %v504
    %966 = vmatprep.subr.mxu0 0.0
    %967 = vmatpush2.msra.mxu0 %v495
    %968 = vmatprep.subr.mxu0 0.0
    %969 = vmatpush2.msra.mxu0 %v486
    %970 = vmatprep.mubr.f32.mxu0 %v333
    %971 = vmatmul.mubr.f32.gmra.mxu0 %v332
    %v972 = vpop.f32.mrf.mxu0
    %v973 = vadd.f32 0.0, %v972
    %v974 = vpop.f32.mrf.mxu0
    %975 = vdwg.mxu0
    %v976 = vld [vmem:[#allocation6 + $0x8] sm:$0xff]
    %v977 = vld [vmem:[#allocation6 + $0x38] sm:$0xff]
    %vm978 = vcmask 588800
    %v980 = vsel %vm978, %v976, 0
    %v983 = vsel %vm978, %v977, 0
    %985 = vmatprep.subr.mxu0 0.0
    %986 = vmatpush1.msra.mxu0 0.0
    %987 = vmatprep.subr.mxu0 0.0
    %988 = vmatpush1.msra.mxu0 0.0
    %989 = vmatprep.subr.mxu0 0.0
    %990 = vmatpush1.msra.mxu0 0.0
    %991 = vmatprep.subr.mxu0 0.0
    %992 = vmatpush1.msra.mxu0 0.0
    %993 = vmatprep.subr.mxu0 0.0
    %994 = vmatpush1.msra.mxu0 0.0
    %995 = vmatprep.subr.mxu0 0.0
    %996 = vmatpush1.msra.mxu0 0.0
    %997 = vmatprep.subr.mxu0 0.0
    %998 = vmatpush1.msra.mxu0 0.0
    %999 = vmatprep.subr.mxu0 0.0
    %1000 = vmatpush1.msra.mxu0 %v973
    %1001 = vmatprep.subr.mxu0 0.0
    %1002 = vmatpush1.msra.mxu0 %v904
    %1003 = vmatprep.subr.mxu0 0.0
    %1004 = vmatpush1.msra.mxu0 %v902
    %1005 = vmatprep.subr.mxu0 0.0
    %1006 = vmatpush1.msra.mxu0 %v833
    %1007 = vmatprep.subr.mxu0 0.0
    %1008 = vmatpush1.msra.mxu0 %v831
    %1009 = vmatprep.subr.mxu0 0.0
    %1010 = vmatpush1.msra.mxu0 %v762
    %1011 = vmatprep.subr.mxu0 0.0
    %1012 = vmatpush1.msra.mxu0 %v760
    %1013 = vmatprep.subr.mxu0 0.0
    %1014 = vmatpush1.msra.mxu0 %v691
    %1015 = vmatprep.subr.mxu0 0.0
    %1016 = vmatpush1.msra.mxu0 %v689
    %1017 = vmatprep.subr.mxu0 0.0
    %1018 = vmatpush2.msra.mxu0 0.0
    %1019 = vmatprep.subr.mxu0 0.0
    %1020 = vmatpush2.msra.mxu0 0.0
    %1021 = vmatprep.subr.mxu0 0.0
    %1022 = vmatpush2.msra.mxu0 0.0
    %1023 = vmatprep.subr.mxu0 0.0
    %1024 = vmatpush2.msra.mxu0 0.0
    %1025 = vmatprep.subr.mxu0 0.0
    %1026 = vmatpush2.msra.mxu0 0.0
    %1027 = vmatprep.subr.mxu0 0.0
    %1028 = vmatpush2.msra.mxu0 0.0
    %1029 = vmatprep.subr.mxu0 0.0
    %1030 = vmatpush2.msra.mxu0 0.0
    %1031 = vmatprep.subr.mxu0 0.0
    %1032 = vmatpush2.msra.mxu0 0.0
    %1033 = vmatprep.subr.mxu0 0.0
    %1034 = vmatpush2.msra.mxu0 0.0
    %1035 = vmatprep.subr.mxu0 0.0
    %1036 = vmatpush2.msra.mxu0 0.0
    %1037 = vmatprep.subr.mxu0 0.0
    %1038 = vmatpush2.msra.mxu0 0.0
    %1039 = vmatprep.subr.mxu0 0.0
    %1040 = vmatpush2.msra.mxu0 0.0
    %1041 = vmatprep.subr.mxu0 0.0
    %1042 = vmatpush2.msra.mxu0 0.0
    %1043 = vmatprep.subr.mxu0 0.0
    %1044 = vmatpush2.msra.mxu0 0.0
    %1045 = vmatprep.subr.mxu0 0.0
    %1046 = vmatpush2.msra.mxu0 0.0
    %1047 = vmatprep.subr.mxu0 0.0
    %1048 = vmatpush2.msra.mxu0 0.0
    %1049 = vmatprep.mubr.f32.mxu0 0.0
    %1050 = vmatmul.mubr.f32.gmra.mxu0 %v980
    %v1051 = vpop.f32.mrf.mxu0
    %v1052 = vadd.f32 0.0, %v1051
    %v1053 = vpop.f32.mrf.mxu0
    %1054 = vmatprep.mubr.f32.mxu0 0.0
    %1055 = vmatmul.mubr.f32.gmra.mxu0 %v983
    %v1056 = vpop.f32.mrf.mxu0
    %v1057 = vadd.f32 0.0, %v1056
    %v1058 = vpop.f32.mrf.mxu0
    %1059 = vdwg.mxu0
    %v1060 = vld [vmem:[#allocation6 + $0x28] sm:$0xff]
    %v1061 = vld [vmem:[#allocation6 + $0x58] sm:$0xff]
    %1063 = vset.pattern.permute.xlu0 3
    %1064 = vperm.xlu0 %1063, %v1060
    %v1065 = vpop.permute.xlu0 %1064
    %1068 = vset.pattern.permute.xlu0 3
    %1069 = vperm.xlu0 %1068, %v1061
    %v1070 = vpop.permute.xlu0 %1069
    %v1072 = vadd.f32 %v1052, %v1065
    %v1073 = vadd.f32 %v1057, %v1070
    %vm1074 = vcmask 523264
    %v1075 = vsel %vm1074, %v1072, 0.0
    %1076 = vadd.xlane.f32.xlu0 %v1075
    %v1077 = vpop.xlane.xlu0 %1076
    %v1078 = vsel %vm1074, %v1073, 0.0
    %1079 = vadd.xlane.f32.xlu0 %v1078
    %v1080 = vpop.xlane.xlu0 %1079
    %v1081 = vmul.f32 %v1072, %v1072
    %v1082 = vmul.f32 %v1073, %v1073
    %v1083 = vsel %vm1074, %v1081, 0.0
    %1084 = vadd.xlane.f32.xlu0 %v1083
    %v1085 = vpop.xlane.xlu0 %1084
    %v1086 = vsel %vm1074, %v1082, 0.0
    %1087 = vadd.xlane.f32.xlu0 %v1086
    %v1088 = vpop.xlane.xlu0 %1087
    %1089 = vrot.lane.b32.xlu0 %v1060, 104
    %v1090 = vpop.permute.xlu0 %1089
    %1091 = vrot.lane.b32.xlu0 %v1061, 104
    %v1092 = vpop.permute.xlu0 %1091
    %vm1093 = vcmask 130048
    %v1094 = vsel %vm1093, %v1090, 0
    %v1096 = vsel %vm1093, %v1092, 0
    %1098 = vmatprep.subr.mxu0 0.0
    %1099 = vmatpush1.msra.mxu0 0.0
    %1100 = vmatprep.subr.mxu0 0.0
    %1101 = vmatpush1.msra.mxu0 0.0
    %1102 = vmatprep.subr.mxu0 0.0
    %1103 = vmatpush1.msra.mxu0 0.0
    %1104 = vmatprep.subr.mxu0 0.0
    %1105 = vmatpush1.msra.mxu0 0.0
    %1106 = vmatprep.subr.mxu0 0.0
    %1107 = vmatpush1.msra.mxu0 0.0
    %1108 = vmatprep.subr.mxu0 0.0
    %1109 = vmatpush1.msra.mxu0 0.0
    %1110 = vmatprep.subr.mxu0 0.0
    %1111 = vmatpush1.msra.mxu0 0.0
    %1112 = vmatprep.subr.mxu0 0.0
    %1113 = vmatpush1.msra.mxu0 0.0
    %1114 = vmatprep.subr.mxu0 0.0
    %1115 = vmatpush1.msra.mxu0 0.0
    %1116 = vmatprep.subr.mxu0 0.0
    %1117 = vmatpush1.msra.mxu0 0.0
    %1118 = vmatprep.subr.mxu0 0.0
    %1119 = vmatpush1.msra.mxu0 0.0
    %1120 = vmatprep.subr.mxu0 0.0
    %1121 = vmatpush1.msra.mxu0 0.0
    %1122 = vmatprep.subr.mxu0 0.0
    %1123 = vmatpush1.msra.mxu0 0.0
    %1124 = vmatprep.subr.mxu0 0.0
    %1125 = vmatpush1.msra.mxu0 0.0
    %1126 = vmatprep.subr.mxu0 0.0
    %1127 = vmatpush1.msra.mxu0 %v1080
    %1128 = vmatprep.subr.mxu0 0.0
    %1129 = vmatpush1.msra.mxu0 %v1077
    %1130 = vmatprep.subr.mxu0 0.0
    %1131 = vmatpush2.msra.mxu0 0.0
    %1132 = vmatprep.subr.mxu0 0.0
    %1133 = vmatpush2.msra.mxu0 0.0
    %1134 = vmatprep.subr.mxu0 0.0
    %1135 = vmatpush2.msra.mxu0 0.0
    %1136 = vmatprep.subr.mxu0 0.0
    %1137 = vmatpush2.msra.mxu0 0.0
    %1138 = vmatprep.subr.mxu0 0.0
    %1139 = vmatpush2.msra.mxu0 0.0
    %1140 = vmatprep.subr.mxu0 0.0
    %1141 = vmatpush2.msra.mxu0 0.0
    %1142 = vmatprep.subr.mxu0 0.0
    %1143 = vmatpush2.msra.mxu0 0.0
    %1144 = vmatprep.subr.mxu0 0.0
    %1145 = vmatpush2.msra.mxu0 0.0
    %1146 = vmatprep.subr.mxu0 0.0
    %1147 = vmatpush2.msra.mxu0 0.0
    %1148 = vmatprep.subr.mxu0 0.0
    %1149 = vmatpush2.msra.mxu0 0.0
    %1150 = vmatprep.subr.mxu0 0.0
    %1151 = vmatpush2.msra.mxu0 0.0
    %1152 = vmatprep.subr.mxu0 0.0
    %1153 = vmatpush2.msra.mxu0 0.0
    %1154 = vmatprep.subr.mxu0 0.0
    %1155 = vmatpush2.msra.mxu0 0.0
    %1156 = vmatprep.subr.mxu0 0.0
    %1157 = vmatpush2.msra.mxu0 0.0
    %1158 = vmatprep.subr.mxu0 0.0
    %1159 = vmatpush2.msra.mxu0 0.0
    %1160 = vmatprep.subr.mxu0 0.0
    %1161 = vmatpush2.msra.mxu0 0.0
    %1162 = vmatprep.mubr.f32.mxu0 0.0
    %1163 = vmatmul.mubr.f32.gmra.mxu0 %v1094
    %v1164 = vpop.f32.mrf.mxu0
    %v1165 = vadd.f32 0.0, %v1164
    %v1166 = vpop.f32.mrf.mxu0
    %1167 = vmatprep.mubr.f32.mxu0 0.0
    %1168 = vmatmul.mubr.f32.gmra.mxu0 %v1096
    %v1169 = vpop.f32.mrf.mxu0
    %v1170 = vadd.f32 0.0, %v1169
    %v1171 = vpop.f32.mrf.mxu0
    %1172 = vdwg.mxu0
    %1173 = vmatprep.subr.mxu0 0.0
    %1174 = vmatpush1.msra.mxu0 0.0
    %1175 = vmatprep.subr.mxu0 0.0
    %1176 = vmatpush1.msra.mxu0 0.0
    %1177 = vmatprep.subr.mxu0 0.0
    %1178 = vmatpush1.msra.mxu0 0.0
    %1179 = vmatprep.subr.mxu0 0.0
    %1180 = vmatpush1.msra.mxu0 0.0
    %1181 = vmatprep.subr.mxu0 0.0
    %1182 = vmatpush1.msra.mxu0 0.0
    %1183 = vmatprep.subr.mxu0 0.0
    %1184 = vmatpush1.msra.mxu0 0.0
    %1185 = vmatprep.subr.mxu0 0.0
    %1186 = vmatpush1.msra.mxu0 0.0
    %1187 = vmatprep.subr.mxu0 0.0
    %1188 = vmatpush1.msra.mxu0 0.0
    %1189 = vmatprep.subr.mxu0 0.0
    %1190 = vmatpush1.msra.mxu0 0.0
    %1191 = vmatprep.subr.mxu0 0.0
    %1192 = vmatpush1.msra.mxu0 0.0
    %1193 = vmatprep.subr.mxu0 0.0
    %1194 = vmatpush1.msra.mxu0 0.0
    %1195 = vmatprep.subr.mxu0 0.0
    %1196 = vmatpush1.msra.mxu0 0.0
    %1197 = vmatprep.subr.mxu0 0.0
    %1198 = vmatpush1.msra.mxu0 0.0
    %1199 = vmatprep.subr.mxu0 0.0
    %1200 = vmatpush1.msra.mxu0 0.0
    %1201 = vmatprep.subr.mxu0 0.0
    %1202 = vmatpush1.msra.mxu0 %v1088
    %1203 = vmatprep.subr.mxu0 0.0
    %1204 = vmatpush1.msra.mxu0 %v1085
    %1205 = vmatprep.subr.mxu0 0.0
    %1206 = vmatpush2.msra.mxu0 0.0
    %1207 = vmatprep.subr.mxu0 0.0
    %1208 = vmatpush2.msra.mxu0 0.0
    %1209 = vmatprep.subr.mxu0 0.0
    %1210 = vmatpush2.msra.mxu0 0.0
    %1211 = vmatprep.subr.mxu0 0.0
    %1212 = vmatpush2.msra.mxu0 0.0
    %1213 = vmatprep.subr.mxu0 0.0
    %1214 = vmatpush2.msra.mxu0 0.0
    %1215 = vmatprep.subr.mxu0 0.0
    %1216 = vmatpush2.msra.mxu0 0.0
    %1217 = vmatprep.subr.mxu0 0.0
    %1218 = vmatpush2.msra.mxu0 0.0
    %1219 = vmatprep.subr.mxu0 0.0
    %1220 = vmatpush2.msra.mxu0 0.0
    %1221 = vmatprep.subr.mxu0 0.0
    %1222 = vmatpush2.msra.mxu0 0.0
    %1223 = vmatprep.subr.mxu0 0.0
    %1224 = vmatpush2.msra.mxu0 0.0
    %1225 = vmatprep.subr.mxu0 0.0
    %1226 = vmatpush2.msra.mxu0 0.0
    %1227 = vmatprep.subr.mxu0 0.0
    %1228 = vmatpush2.msra.mxu0 0.0
    %1229 = vmatprep.subr.mxu0 0.0
    %1230 = vmatpush2.msra.mxu0 0.0
    %1231 = vmatprep.subr.mxu0 0.0
    %1232 = vmatpush2.msra.mxu0 0.0
    %1233 = vmatprep.subr.mxu0 0.0
    %1234 = vmatpush2.msra.mxu0 0.0
    %1235 = vmatprep.subr.mxu0 0.0
    %1236 = vmatpush2.msra.mxu0 0.0
    %1237 = vmatprep.mubr.f32.mxu0 0.0
    %1238 = vmatmul.mubr.f32.gmra.mxu0 %v1094
    %v1239 = vpop.f32.mrf.mxu0
    %v1240 = vadd.f32 0.0, %v1239
    %v1241 = vpop.f32.mrf.mxu0
    %1242 = vmatprep.mubr.f32.mxu0 0.0
    %1243 = vmatmul.mubr.f32.gmra.mxu0 %v1096
    %v1244 = vpop.f32.mrf.mxu0
    %v1245 = vadd.f32 0.0, %v1244
    %v1246 = vpop.f32.mrf.mxu0
    %1247 = vdwg.mxu0
    %v1248 = vmul.f32 %v1165, %v1165
    %v1249 = vmul.f32 %v1170, %v1170
    %v1250 = vsub.f32 %v1240, %v1248
    %v1251 = vsub.f32 %v1245, %v1249
    %v1252 = vadd.f32 %v1250, 1e-05
    %v1253 = vadd.f32 %v1251, 1e-05
    %v1254 = vrsqrt.pop %v1252
    %v1255 = vrsqrt.pop %v1253
    %1258 = vrot.lane.b32.xlu0 %v1254, 4
    %v1259 = vpop.permute.xlu0 %1258
    %1260 = vrot.lane.b32.xlu0 %v1255, 4
    %v1261 = vpop.permute.xlu0 %1260
    %v1264 = vmul.f32 %v1060, %v1259
    %v1265 = vmul.f32 %v1061, %v1261
    %1268 = vrot.lane.b32.xlu0 %v1264, 124
    %v1269 = vpop.permute.xlu0 %1268
    %1270 = vrot.lane.b32.xlu0 %v1265, 124
    %v1271 = vpop.permute.xlu0 %1270
    %v1274 = vmul.f32 %v1165, %v1269
    %v1275 = vmul.f32 %v1170, %v1271
    %1278 = vrot.lane.b32.xlu0 %v1274, 5
    %v1279 = vpop.permute.xlu0 %1278
    %1280 = vrot.lane.b32.xlu0 %v1275, 5
    %v1281 = vpop.permute.xlu0 %1280
    %v1284 = vsub.f32 %v1060, %v1279
    %v1285 = vsub.f32 %v1061, %v1281
    %1286 = vset.pattern.permute.xlu0 4
    %1287 = vperm.xlu0 %1286, %v1264
    %v1288 = vpop.permute.xlu0 %1287
    %1290 = vset.pattern.permute.xlu0 4
    %1291 = vperm.xlu0 %1290, %v1265
    %v1292 = vpop.permute.xlu0 %1291
    %v1294 = vmul.f32 %v1072, %v1288
    %v1295 = vmul.f32 %v1073, %v1292
    %1297 = vset.pattern.permute.xlu0 5
    %1298 = vperm.xlu0 %1297, %v1284
    %v1299 = vpop.permute.xlu0 %1298
    %1302 = vset.pattern.permute.xlu0 5
    %1303 = vperm.xlu0 %1302, %v1285
    %v1304 = vpop.permute.xlu0 %1303
    %v1306 = vadd.f32 %v1294, %v1299
    %v1307 = vadd.f32 %v1295, %v1304
    %v1308 = vld [vmem:[#allocation4] sm:$0xff]
    %v1309 = vld [vmem:[#allocation4 + $0x8] sm:$0xff]
    %v1310 = vld [vmem:[#allocation4 + $0x10] sm:$0xff]
    %v1311 = vld [vmem:[#allocation4 + $0x18] sm:$0xff]
    %v1312 = vld [vmem:[#allocation4 + $0x20] sm:$0xff]
    %v1313 = vld [vmem:[#allocation4 + $0x28] sm:$0xff]
    %v1314 = vld [vmem:[#allocation4 + $0x30] sm:$0xff]
    %v1315 = vld [vmem:[#allocation4 + $0x38] sm:$0xff]
    %v1316 = vld [vmem:[#allocation4 + $0x40] sm:$0xff]
    %v1317 = vld [vmem:[#allocation4 + $0x48] sm:$0xff]
    %v1318 = vld [vmem:[#allocation4 + $0x50] sm:$0xff]
    %v1319 = vld [vmem:[#allocation4 + $0x58] sm:$0xff]
    %v1320 = vld [vmem:[#allocation4 + $0x60] sm:$0xff]
    %v1321 = vld [vmem:[#allocation4 + $0x68] sm:$0xff]
    %v1322 = vld [vmem:[#allocation4 + $0x70] sm:$0xff]
    %v1323 = vld [vmem:[#allocation4 + $0x78] sm:$0xff]
    %v1324 = vld [vmem:[#allocation4 + $0x80] sm:$0xff]
    %v1325 = vld [vmem:[#allocation4 + $0x88] sm:$0xff]
    %v1326 = vld [vmem:[#allocation4 + $0x90] sm:$0xff]
    %v1327 = vld [vmem:[#allocation4 + $0x98] sm:$0xff]
    %v1328 = vld [vmem:[#allocation4 + $0xa0] sm:$0xff]
    %v1329 = vld [vmem:[#allocation4 + $0xa8] sm:$0xff]
    %v1330 = vld [vmem:[#allocation4 + $0xb0] sm:$0xff]
    %v1331 = vld [vmem:[#allocation4 + $0xb8] sm:$0xff]
    %v1332 = vld [vmem:[#allocation4 + $0xc0] sm:$0xff]
    %v1333 = vld [vmem:[#allocation4 + $0xc8] sm:$0xff]
    %v1334 = vld [vmem:[#allocation4 + $0xd0] sm:$0xff]
    %v1335 = vld [vmem:[#allocation4 + $0xd8] sm:$0xff]
    %v1336 = vld [vmem:[#allocation4 + $0xe0] sm:$0xff]
    %v1337 = vld [vmem:[#allocation4 + $0xe8] sm:$0xff]
    %v1338 = vld [vmem:[#allocation4 + $0xf0] sm:$0xff]
    %v1339 = vld [vmem:[#allocation4 + $0xf8] sm:$0xff]
    %v1340 = vld [vmem:[#allocation4 + $0x100] sm:$0xff]
    %v1341 = vld [vmem:[#allocation4 + $0x108] sm:$0xff]
    %v1342 = vld [vmem:[#allocation4 + $0x110] sm:$0xff]
    %v1343 = vld [vmem:[#allocation4 + $0x118] sm:$0xff]
    %v1344 = vld [vmem:[#allocation4 + $0x120] sm:$0xff]
    %v1345 = vld [vmem:[#allocation4 + $0x128] sm:$0xff]
    %v1346 = vld [vmem:[#allocation4 + $0x130] sm:$0xff]
    %v1347 = vld [vmem:[#allocation4 + $0x138] sm:$0xff]
    %v1348 = vld [vmem:[#allocation4 + $0x140] sm:$0xff]
    %v1349 = vld [vmem:[#allocation4 + $0x148] sm:$0xff]
    %v1350 = vld [vmem:[#allocation4 + $0x150] sm:$0xff]
    %v1351 = vld [vmem:[#allocation4 + $0x158] sm:$0xff]
    %v1352 = vld [vmem:[#allocation4 + $0x160] sm:$0xff]
    %v1353 = vld [vmem:[#allocation4 + $0x168] sm:$0xff]
    %v1354 = vld [vmem:[#allocation4 + $0x170] sm:$0xff]
    %v1355 = vld [vmem:[#allocation4 + $0x178] sm:$0xff]
    %v1356 = vld [vmem:[#allocation4 + $0x180] sm:$0xff]
    %v1357 = vld [vmem:[#allocation4 + $0x188] sm:$0xff]
    %v1358 = vld [vmem:[#allocation4 + $0x190] sm:$0xff]
    %v1359 = vld [vmem:[#allocation4 + $0x198] sm:$0xff]
    %v1360 = vld [vmem:[#allocation4 + $0x1a0] sm:$0xff]
    %v1361 = vld [vmem:[#allocation4 + $0x1a8] sm:$0xff]
    %v1362 = vld [vmem:[#allocation4 + $0x1b0] sm:$0xff]
    %v1363 = vld [vmem:[#allocation4 + $0x1b8] sm:$0xff]
    %v1364 = vld [vmem:[#allocation4 + $0x1c0] sm:$0xff]
    %v1365 = vld [vmem:[#allocation4 + $0x1c8] sm:$0xff]
    %v1366 = vld [vmem:[#allocation4 + $0x1d0] sm:$0xff]
    %v1367 = vld [vmem:[#allocation4 + $0x1d8] sm:$0xff]
    %v1368 = vld [vmem:[#allocation4 + $0x1e0] sm:$0xff]
    %v1369 = vld [vmem:[#allocation4 + $0x1e8] sm:$0xff]
    %v1370 = vld [vmem:[#allocation4 + $0x1f0] sm:$0xff]
    %v1371 = vld [vmem:[#allocation4 + $0x1f8] sm:$0xff]
    %v1372 = vld [vmem:[#allocation4 + $0x200] sm:$0xff]
    %v1373 = vld [vmem:[#allocation4 + $0x208] sm:$0xff]
    %v1374 = vld [vmem:[#allocation4 + $0x210] sm:$0xff]
    %v1375 = vld [vmem:[#allocation4 + $0x218] sm:$0xff]
    %v1376 = vld [vmem:[#allocation4 + $0x220] sm:$0xff]
    %v1377 = vld [vmem:[#allocation4 + $0x228] sm:$0xff]
    %v1378 = vld [vmem:[#allocation4 + $0x230] sm:$0xff]
    %v1379 = vld [vmem:[#allocation4 + $0x238] sm:$0xff]
    %v1381 = vsel %vm1074, %v1306, 0
    %v1384 = vsel %vm1074, %v1307, 0
    %1386 = vmatprep.subr.mxu0 0.0
    %1387 = vmatpush1.msra.mxu0 0.0
    %1388 = vmatprep.subr.mxu0 0.0
    %1389 = vmatpush1.msra.mxu0 0.0
    %1390 = vmatprep.subr.mxu0 0.0
    %1391 = vmatpush1.msra.mxu0 0.0
    %1392 = vmatprep.subr.mxu0 0.0
    %1393 = vmatpush1.msra.mxu0 0.0
    %1394 = vmatprep.subr.mxu0 0.0
    %1395 = vmatpush1.msra.mxu0 0.0
    %1396 = vmatprep.subr.mxu0 0.0
    %1397 = vmatpush1.msra.mxu0 0.0
    %1398 = vmatprep.subr.mxu0 0.0
    %1399 = vmatpush1.msra.mxu0 0.0
    %1400 = vmatprep.subr.mxu0 0.0
    %1401 = vmatpush1.msra.mxu0 0.0
    %1402 = vmatprep.subr.mxu0 %v1372
    %1403 = vmatpush1.msra.mxu0 %v1371
    %1404 = vmatprep.subr.mxu0 %v1363
    %1405 = vmatpush1.msra.mxu0 %v1362
    %1406 = vmatprep.subr.mxu0 %v1354
    %1407 = vmatpush1.msra.mxu0 %v1353
    %1408 = vmatprep.subr.mxu0 %v1345
    %1409 = vmatpush1.msra.mxu0 %v1344
    %1410 = vmatprep.subr.mxu0 %v1336
    %1411 = vmatpush1.msra.mxu0 %v1335
    %1412 = vmatprep.subr.mxu0 %v1327
    %1413 = vmatpush1.msra.mxu0 %v1326
    %1414 = vmatprep.subr.mxu0 %v1318
    %1415 = vmatpush1.msra.mxu0 %v1317
    %1416 = vmatprep.subr.mxu0 %v1309
    %1417 = vmatpush1.msra.mxu0 %v1308
    %1418 = vmatprep.subr.mxu0 0.0
    %1419 = vmatpush2.msra.mxu0 0.0
    %1420 = vmatprep.subr.mxu0 0.0
    %1421 = vmatpush2.msra.mxu0 0.0
    %1422 = vmatprep.subr.mxu0 0.0
    %1423 = vmatpush2.msra.mxu0 0.0
    %1424 = vmatprep.subr.mxu0 0.0
    %1425 = vmatpush2.msra.mxu0 0.0
    %1426 = vmatprep.subr.mxu0 0.0
    %1427 = vmatpush2.msra.mxu0 0.0
    %1428 = vmatprep.subr.mxu0 0.0
    %1429 = vmatpush2.msra.mxu0 0.0
    %1430 = vmatprep.subr.mxu0 0.0
    %1431 = vmatpush2.msra.mxu0 0.0
    %1432 = vmatprep.subr.mxu0 0.0
    %1433 = vmatpush2.msra.mxu0 0.0
    %1434 = vmatprep.subr.mxu0 0.0
    %1435 = vmatpush2.msra.mxu0 0.0
    %1436 = vmatprep.subr.mxu0 0.0
    %1437 = vmatpush2.msra.mxu0 0.0
    %1438 = vmatprep.subr.mxu0 0.0
    %1439 = vmatpush2.msra.mxu0 0.0
    %1440 = vmatprep.subr.mxu0 0.0
    %1441 = vmatpush2.msra.mxu0 0.0
    %1442 = vmatprep.subr.mxu0 0.0
    %1443 = vmatpush2.msra.mxu0 0.0
    %1444 = vmatprep.subr.mxu0 0.0
    %1445 = vmatpush2.msra.mxu0 0.0
    %1446 = vmatprep.subr.mxu0 0.0
    %1447 = vmatpush2.msra.mxu0 0.0
    %1448 = vmatprep.subr.mxu0 0.0
    %1449 = vmatpush2.msra.mxu0 0.0
    %1450 = vmatprep.mubr.f32.mxu0 0.0
    %1451 = vmatmul.mubr.f32.gmra.mxu0 %v1381
    %v1452 = vpop.f32.mrf.mxu0
    %v1453 = vadd.f32 0.0, %v1452
    %v1454 = vpop.f32.mrf.mxu0
    %v1455 = vadd.f32 0.0, %v1454
    %1456 = vmatprep.mubr.f32.mxu0 0.0
    %1457 = vmatmul.mubr.f32.gmra.mxu0 %v1384
    %v1458 = vpop.f32.mrf.mxu0
    %v1459 = vadd.f32 0.0, %v1458
    %v1460 = vpop.f32.mrf.mxu0
    %v1461 = vadd.f32 0.0, %v1460
    %1462 = vdwg.mxu0
    %1463 = vmatprep.subr.mxu0 0.0
    %1464 = vmatpush1.msra.mxu0 0.0
    %1465 = vmatprep.subr.mxu0 0.0
    %1466 = vmatpush1.msra.mxu0 0.0
    %1467 = vmatprep.subr.mxu0 0.0
    %1468 = vmatpush1.msra.mxu0 0.0
    %1469 = vmatprep.subr.mxu0 0.0
    %1470 = vmatpush1.msra.mxu0 0.0
    %1471 = vmatprep.subr.mxu0 0.0
    %1472 = vmatpush1.msra.mxu0 0.0
    %1473 = vmatprep.subr.mxu0 0.0
    %1474 = vmatpush1.msra.mxu0 0.0
    %1475 = vmatprep.subr.mxu0 0.0
    %1476 = vmatpush1.msra.mxu0 0.0
    %1477 = vmatprep.subr.mxu0 0.0
    %1478 = vmatpush1.msra.mxu0 0.0
    %1479 = vmatprep.subr.mxu0 %v1374
    %1480 = vmatpush1.msra.mxu0 %v1373
    %1481 = vmatprep.subr.mxu0 %v1365
    %1482 = vmatpush1.msra.mxu0 %v1364
    %1483 = vmatprep.subr.mxu0 %v1356
    %1484 = vmatpush1.msra.mxu0 %v1355
    %1485 = vmatprep.subr.mxu0 %v1347
    %1486 = vmatpush1.msra.mxu0 %v1346
    %1487 = vmatprep.subr.mxu0 %v1338
    %1488 = vmatpush1.msra.mxu0 %v1337
    %1489 = vmatprep.subr.mxu0 %v1329
    %1490 = vmatpush1.msra.mxu0 %v1328
    %1491 = vmatprep.subr.mxu0 %v1320
    %1492 = vmatpush1.msra.mxu0 %v1319
    %1493 = vmatprep.subr.mxu0 %v1311
    %1494 = vmatpush1.msra.mxu0 %v1310
    %1495 = vmatprep.subr.mxu0 0.0
    %1496 = vmatpush2.msra.mxu0 0.0
    %1497 = vmatprep.subr.mxu0 0.0
    %1498 = vmatpush2.msra.mxu0 0.0
    %1499 = vmatprep.subr.mxu0 0.0
    %1500 = vmatpush2.msra.mxu0 0.0
    %1501 = vmatprep.subr.mxu0 0.0
    %1502 = vmatpush2.msra.mxu0 0.0
    %1503 = vmatprep.subr.mxu0 0.0
    %1504 = vmatpush2.msra.mxu0 0.0
    %1505 = vmatprep.subr.mxu0 0.0
    %1506 = vmatpush2.msra.mxu0 0.0
    %1507 = vmatprep.subr.mxu0 0.0
    %1508 = vmatpush2.msra.mxu0 0.0
    %1509 = vmatprep.subr.mxu0 0.0
    %1510 = vmatpush2.msra.mxu0 0.0
    %1511 = vmatprep.subr.mxu0 0.0
    %1512 = vmatpush2.msra.mxu0 0.0
    %1513 = vmatprep.subr.mxu0 0.0
    %1514 = vmatpush2.msra.mxu0 0.0
    %1515 = vmatprep.subr.mxu0 0.0
    %1516 = vmatpush2.msra.mxu0 0.0
    %1517 = vmatprep.subr.mxu0 0.0
    %1518 = vmatpush2.msra.mxu0 0.0
    %1519 = vmatprep.subr.mxu0 0.0
    %1520 = vmatpush2.msra.mxu0 0.0
    %1521 = vmatprep.subr.mxu0 0.0
    %1522 = vmatpush2.msra.mxu0 0.0
    %1523 = vmatprep.subr.mxu0 0.0
    %1524 = vmatpush2.msra.mxu0 0.0
    %1525 = vmatprep.subr.mxu0 0.0
    %1526 = vmatpush2.msra.mxu0 0.0
    %1527 = vmatprep.mubr.f32.mxu0 0.0
    %1528 = vmatmul.mubr.f32.gmra.mxu0 %v1381
    %v1529 = vpop.f32.mrf.mxu0
    %v1530 = vadd.f32 0.0, %v1529
    %v1531 = vpop.f32.mrf.mxu0
    %v1532 = vadd.f32 0.0, %v1531
    %1533 = vmatprep.mubr.f32.mxu0 0.0
    %1534 = vmatmul.mubr.f32.gmra.mxu0 %v1384
    %v1535 = vpop.f32.mrf.mxu0
    %v1536 = vadd.f32 0.0, %v1535
    %v1537 = vpop.f32.mrf.mxu0
    %v1538 = vadd.f32 0.0, %v1537
    %1539 = vdwg.mxu0
    %1540 = vmatprep.subr.mxu0 0.0
    %1541 = vmatpush1.msra.mxu0 0.0
    %1542 = vmatprep.subr.mxu0 0.0
    %1543 = vmatpush1.msra.mxu0 0.0
    %1544 = vmatprep.subr.mxu0 0.0
    %1545 = vmatpush1.msra.mxu0 0.0
    %1546 = vmatprep.subr.mxu0 0.0
    %1547 = vmatpush1.msra.mxu0 0.0
    %1548 = vmatprep.subr.mxu0 0.0
    %1549 = vmatpush1.msra.mxu0 0.0
    %1550 = vmatprep.subr.mxu0 0.0
    %1551 = vmatpush1.msra.mxu0 0.0
    %1552 = vmatprep.subr.mxu0 0.0
    %1553 = vmatpush1.msra.mxu0 0.0
    %1554 = vmatprep.subr.mxu0 0.0
    %1555 = vmatpush1.msra.mxu0 0.0
    %1556 = vmatprep.subr.mxu0 %v1376
    %1557 = vmatpush1.msra.mxu0 %v1375
    %1558 = vmatprep.subr.mxu0 %v1367
    %1559 = vmatpush1.msra.mxu0 %v1366
    %1560 = vmatprep.subr.mxu0 %v1358
    %1561 = vmatpush1.msra.mxu0 %v1357
    %1562 = vmatprep.subr.mxu0 %v1349
    %1563 = vmatpush1.msra.mxu0 %v1348
    %1564 = vmatprep.subr.mxu0 %v1340
    %1565 = vmatpush1.msra.mxu0 %v1339
    %1566 = vmatprep.subr.mxu0 %v1331
    %1567 = vmatpush1.msra.mxu0 %v1330
    %1568 = vmatprep.subr.mxu0 %v1322
    %1569 = vmatpush1.msra.mxu0 %v1321
    %1570 = vmatprep.subr.mxu0 %v1313
    %1571 = vmatpush1.msra.mxu0 %v1312
    %1572 = vmatprep.subr.mxu0 0.0
    %1573 = vmatpush2.msra.mxu0 0.0
    %1574 = vmatprep.subr.mxu0 0.0
    %1575 = vmatpush2.msra.mxu0 0.0
    %1576 = vmatprep.subr.mxu0 0.0
    %1577 = vmatpush2.msra.mxu0 0.0
    %1578 = vmatprep.subr.mxu0 0.0
    %1579 = vmatpush2.msra.mxu0 0.0
    %1580 = vmatprep.subr.mxu0 0.0
    %1581 = vmatpush2.msra.mxu0 0.0
    %1582 = vmatprep.subr.mxu0 0.0
    %1583 = vmatpush2.msra.mxu0 0.0
    %1584 = vmatprep.subr.mxu0 0.0
    %1585 = vmatpush2.msra.mxu0 0.0
    %1586 = vmatprep.subr.mxu0 0.0
    %1587 = vmatpush2.msra.mxu0 0.0
    %1588 = vmatprep.subr.mxu0 0.0
    %1589 = vmatpush2.msra.mxu0 0.0
    %1590 = vmatprep.subr.mxu0 0.0
    %1591 = vmatpush2.msra.mxu0 0.0
    %1592 = vmatprep.subr.mxu0 0.0
    %1593 = vmatpush2.msra.mxu0 0.0
    %1594 = vmatprep.subr.mxu0 0.0
    %1595 = vmatpush2.msra.mxu0 0.0
    %1596 = vmatprep.subr.mxu0 0.0
    %1597 = vmatpush2.msra.mxu0 0.0
    %1598 = vmatprep.subr.mxu0 0.0
    %1599 = vmatpush2.msra.mxu0 0.0
    %1600 = vmatprep.subr.mxu0 0.0
    %1601 = vmatpush2.msra.mxu0 0.0
    %1602 = vmatprep.subr.mxu0 0.0
    %1603 = vmatpush2.msra.mxu0 0.0
    %1604 = vmatprep.mubr.f32.mxu0 0.0
    %1605 = vmatmul.mubr.f32.gmra.mxu0 %v1381
    %v1606 = vpop.f32.mrf.mxu0
    %v1607 = vadd.f32 0.0, %v1606
    %v1608 = vpop.f32.mrf.mxu0
    %v1609 = vadd.f32 0.0, %v1608
    %1610 = vmatprep.mubr.f32.mxu0 0.0
    %1611 = vmatmul.mubr.f32.gmra.mxu0 %v1384
    %v1612 = vpop.f32.mrf.mxu0
    %v1613 = vadd.f32 0.0, %v1612
    %v1614 = vpop.f32.mrf.mxu0
    %v1615 = vadd.f32 0.0, %v1614
    %1616 = vdwg.mxu0
    %1617 = vmatprep.subr.mxu0 0.0
    %1618 = vmatpush1.msra.mxu0 0.0
    %1619 = vmatprep.subr.mxu0 0.0
    %1620 = vmatpush1.msra.mxu0 0.0
    %1621 = vmatprep.subr.mxu0 0.0
    %1622 = vmatpush1.msra.mxu0 0.0
    %1623 = vmatprep.subr.mxu0 0.0
    %1624 = vmatpush1.msra.mxu0 0.0
    %1625 = vmatprep.subr.mxu0 0.0
    %1626 = vmatpush1.msra.mxu0 0.0
    %1627 = vmatprep.subr.mxu0 0.0
    %1628 = vmatpush1.msra.mxu0 0.0
    %1629 = vmatprep.subr.mxu0 0.0
    %1630 = vmatpush1.msra.mxu0 0.0
    %1631 = vmatprep.subr.mxu0 0.0
    %1632 = vmatpush1.msra.mxu0 0.0
    %1633 = vmatprep.subr.mxu0 %v1378
    %1634 = vmatpush1.msra.mxu0 %v1377
    %1635 = vmatprep.subr.mxu0 %v1369
    %1636 = vmatpush1.msra.mxu0 %v1368
    %1637 = vmatprep.subr.mxu0 %v1360
    %1638 = vmatpush1.msra.mxu0 %v1359
    %1639 = vmatprep.subr.mxu0 %v1351
    %1640 = vmatpush1.msra.mxu0 %v1350
    %1641 = vmatprep.subr.mxu0 %v1342
    %1642 = vmatpush1.msra.mxu0 %v1341
    %1643 = vmatprep.subr.mxu0 %v1333
    %1644 = vmatpush1.msra.mxu0 %v1332
    %1645 = vmatprep.subr.mxu0 %v1324
    %1646 = vmatpush1.msra.mxu0 %v1323
    %1647 = vmatprep.subr.mxu0 %v1315
    %1648 = vmatpush1.msra.mxu0 %v1314
    %1649 = vmatprep.subr.mxu0 0.0
    %1650 = vmatpush2.msra.mxu0 0.0
    %1651 = vmatprep.subr.mxu0 0.0
    %1652 = vmatpush2.msra.mxu0 0.0
    %1653 = vmatprep.subr.mxu0 0.0
    %1654 = vmatpush2.msra.mxu0 0.0
    %1655 = vmatprep.subr.mxu0 0.0
    %1656 = vmatpush2.msra.mxu0 0.0
    %1657 = vmatprep.subr.mxu0 0.0
    %1658 = vmatpush2.msra.mxu0 0.0
    %1659 = vmatprep.subr.mxu0 0.0
    %1660 = vmatpush2.msra.mxu0 0.0
    %1661 = vmatprep.subr.mxu0 0.0
    %1662 = vmatpush2.msra.mxu0 0.0
    %1663 = vmatprep.subr.mxu0 0.0
    %1664 = vmatpush2.msra.mxu0 0.0
    %1665 = vmatprep.subr.mxu0 0.0
    %1666 = vmatpush2.msra.mxu0 0.0
    %1667 = vmatprep.subr.mxu0 0.0
    %1668 = vmatpush2.msra.mxu0 0.0
    %1669 = vmatprep.subr.mxu0 0.0
    %1670 = vmatpush2.msra.mxu0 0.0
    %1671 = vmatprep.subr.mxu0 0.0
    %1672 = vmatpush2.msra.mxu0 0.0
    %1673 = vmatprep.subr.mxu0 0.0
    %1674 = vmatpush2.msra.mxu0 0.0
    %1675 = vmatprep.subr.mxu0 0.0
    %1676 = vmatpush2.msra.mxu0 0.0
    %1677 = vmatprep.subr.mxu0 0.0
    %1678 = vmatpush2.msra.mxu0 0.0
    %1679 = vmatprep.subr.mxu0 0.0
    %1680 = vmatpush2.msra.mxu0 0.0
    %1681 = vmatprep.mubr.f32.mxu0 0.0
    %1682 = vmatmul.mubr.f32.gmra.mxu0 %v1381
    %v1683 = vpop.f32.mrf.mxu0
    %v1684 = vadd.f32 0.0, %v1683
    %v1685 = vpop.f32.mrf.mxu0
    %v1686 = vadd.f32 0.0, %v1685
    %1687 = vmatprep.mubr.f32.mxu0 0.0
    %1688 = vmatmul.mubr.f32.gmra.mxu0 %v1384
    %v1689 = vpop.f32.mrf.mxu0
    %v1690 = vadd.f32 0.0, %v1689
    %v1691 = vpop.f32.mrf.mxu0
    %v1692 = vadd.f32 0.0, %v1691
    %1693 = vdwg.mxu0
    %1694 = vmatprep.subr.mxu0 0.0
    %1695 = vmatpush1.msra.mxu0 0.0
    %1696 = vmatprep.subr.mxu0 0.0
    %1697 = vmatpush1.msra.mxu0 0.0
    %1698 = vmatprep.subr.mxu0 0.0
    %1699 = vmatpush1.msra.mxu0 0.0
    %1700 = vmatprep.subr.mxu0 0.0
    %1701 = vmatpush1.msra.mxu0 0.0
    %1702 = vmatprep.subr.mxu0 0.0
    %1703 = vmatpush1.msra.mxu0 0.0
    %1704 = vmatprep.subr.mxu0 0.0
    %1705 = vmatpush1.msra.mxu0 0.0
    %1706 = vmatprep.subr.mxu0 0.0
    %1707 = vmatpush1.msra.mxu0 0.0
    %1708 = vmatprep.subr.mxu0 0.0
    %1709 = vmatpush1.msra.mxu0 0.0
    %1710 = vmatprep.subr.mxu0 0.0
    %1711 = vmatpush1.msra.mxu0 %v1379
    %1712 = vmatprep.subr.mxu0 0.0
    %1713 = vmatpush1.msra.mxu0 %v1370
    %1714 = vmatprep.subr.mxu0 0.0
    %1715 = vmatpush1.msra.mxu0 %v1361
    %1716 = vmatprep.subr.mxu0 0.0
    %1717 = vmatpush1.msra.mxu0 %v1352
    %1718 = vmatprep.subr.mxu0 0.0
    %1719 = vmatpush1.msra.mxu0 %v1343
    %1720 = vmatprep.subr.mxu0 0.0
    %1721 = vmatpush1.msra.mxu0 %v1334
    %1722 = vmatprep.subr.mxu0 0.0
    %1723 = vmatpush1.msra.mxu0 %v1325
    %1724 = vmatprep.subr.mxu0 0.0
    %1725 = vmatpush1.msra.mxu0 %v1316
    %1726 = vmatprep.subr.mxu0 0.0
    %1727 = vmatpush2.msra.mxu0 0.0
    %1728 = vmatprep.subr.mxu0 0.0
    %1729 = vmatpush2.msra.mxu0 0.0
    %1730 = vmatprep.subr.mxu0 0.0
    %1731 = vmatpush2.msra.mxu0 0.0
    %1732 = vmatprep.subr.mxu0 0.0
    %1733 = vmatpush2.msra.mxu0 0.0
    %1734 = vmatprep.subr.mxu0 0.0
    %1735 = vmatpush2.msra.mxu0 0.0
    %1736 = vmatprep.subr.mxu0 0.0
    %1737 = vmatpush2.msra.mxu0 0.0
    %1738 = vmatprep.subr.mxu0 0.0
    %1739 = vmatpush2.msra.mxu0 0.0
    %1740 = vmatprep.subr.mxu0 0.0
    %1741 = vmatpush2.msra.mxu0 0.0
    %1742 = vmatprep.subr.mxu0 0.0
    %1743 = vmatpush2.msra.mxu0 0.0
    %1744 = vmatprep.subr.mxu0 0.0
    %1745 = vmatpush2.msra.mxu0 0.0
    %1746 = vmatprep.subr.mxu0 0.0
    %1747 = vmatpush2.msra.mxu0 0.0
    %1748 = vmatprep.subr.mxu0 0.0
    %1749 = vmatpush2.msra.mxu0 0.0
    %1750 = vmatprep.subr.mxu0 0.0
    %1751 = vmatpush2.msra.mxu0 0.0
    %1752 = vmatprep.subr.mxu0 0.0
    %1753 = vmatpush2.msra.mxu0 0.0
    %1754 = vmatprep.subr.mxu0 0.0
    %1755 = vmatpush2.msra.mxu0 0.0
    %1756 = vmatprep.subr.mxu0 0.0
    %1757 = vmatpush2.msra.mxu0 0.0
    %1758 = vmatprep.mubr.f32.mxu0 0.0
    %1759 = vmatmul.mubr.f32.gmra.mxu0 %v1381
    %v1760 = vpop.f32.mrf.mxu0
    %v1761 = vadd.f32 0.0, %v1760
    %v1762 = vpop.f32.mrf.mxu0
    %1763 = vmatprep.mubr.f32.mxu0 0.0
    %1764 = vmatmul.mubr.f32.gmra.mxu0 %v1384
    %v1765 = vpop.f32.mrf.mxu0
    %v1766 = vadd.f32 0.0, %v1765
    %v1767 = vpop.f32.mrf.mxu0
    %1768 = vdwg.mxu0
    %v1769 = vld [vmem:[#allocation6 + $0x10] sm:$0xff]
    %v1770 = vld [vmem:[#allocation6 + $0x18] sm:$0xff]
    %v1771 = vld [vmem:[#allocation6 + $0x40] sm:$0xff]
    %v1772 = vld [vmem:[#allocation6 + $0x48] sm:$0xff]
    %v1773 = vld [vmem:[#allocation6 + $0x70] sm:$0xff]
    %v1774 = vld [vmem:[#allocation6 + $0x78] sm:$0xff]
    %v1775 = vld [vmem:[#allocation6 + $0xa0] sm:$0xff]
    %v1776 = vld [vmem:[#allocation6 + $0xa8] sm:$0xff]
    %v1778 = vsel %vm1093, %v1770, 0
    %v1781 = vsel %vm1093, %v1772, 0
    %v1784 = vsel %vm1093, %v1774, 0
    %v1787 = vsel %vm1093, %v1776, 0
    %1789 = vmatprep.subr.mxu0 0.0
    %1790 = vmatpush1.msra.mxu0 %v1692
    %1791 = vmatprep.subr.mxu0 0.0
    %1792 = vmatpush1.msra.mxu0 %v1686
    %1793 = vmatprep.subr.mxu0 0.0
    %1794 = vmatpush1.msra.mxu0 %v1690
    %1795 = vmatprep.subr.mxu0 0.0
    %1796 = vmatpush1.msra.mxu0 %v1684
    %1797 = vmatprep.subr.mxu0 0.0
    %1798 = vmatpush1.msra.mxu0 %v1615
    %1799 = vmatprep.subr.mxu0 0.0
    %1800 = vmatpush1.msra.mxu0 %v1609
    %1801 = vmatprep.subr.mxu0 0.0
    %1802 = vmatpush1.msra.mxu0 %v1613
    %1803 = vmatprep.subr.mxu0 0.0
    %1804 = vmatpush1.msra.mxu0 %v1607
    %1805 = vmatprep.subr.mxu0 0.0
    %1806 = vmatpush1.msra.mxu0 %v1538
    %1807 = vmatprep.subr.mxu0 0.0
    %1808 = vmatpush1.msra.mxu0 %v1532
    %1809 = vmatprep.subr.mxu0 0.0
    %1810 = vmatpush1.msra.mxu0 %v1536
    %1811 = vmatprep.subr.mxu0 0.0
    %1812 = vmatpush1.msra.mxu0 %v1530
    %1813 = vmatprep.subr.mxu0 0.0
    %1814 = vmatpush1.msra.mxu0 %v1461
    %1815 = vmatprep.subr.mxu0 0.0
    %1816 = vmatpush1.msra.mxu0 %v1455
    %1817 = vmatprep.subr.mxu0 0.0
    %1818 = vmatpush1.msra.mxu0 %v1459
    %1819 = vmatprep.subr.mxu0 0.0
    %1820 = vmatpush1.msra.mxu0 %v1453
    %1821 = vmatprep.subr.mxu0 0.0
    %1822 = vmatpush2.msra.mxu0 0.0
    %1823 = vmatprep.subr.mxu0 0.0
    %1824 = vmatpush2.msra.mxu0 0.0
    %1825 = vmatprep.subr.mxu0 0.0
    %1826 = vmatpush2.msra.mxu0 0.0
    %1827 = vmatprep.subr.mxu0 0.0
    %1828 = vmatpush2.msra.mxu0 0.0
    %1829 = vmatprep.subr.mxu0 0.0
    %1830 = vmatpush2.msra.mxu0 0.0
    %1831 = vmatprep.subr.mxu0 0.0
    %1832 = vmatpush2.msra.mxu0 0.0
    %1833 = vmatprep.subr.mxu0 0.0
    %1834 = vmatpush2.msra.mxu0 0.0
    %1835 = vmatprep.subr.mxu0 0.0
    %1836 = vmatpush2.msra.mxu0 0.0
    %1837 = vmatprep.subr.mxu0 0.0
    %1838 = vmatpush2.msra.mxu0 0.0
    %1839 = vmatprep.subr.mxu0 0.0
    %1840 = vmatpush2.msra.mxu0 0.0
    %1841 = vmatprep.subr.mxu0 0.0
    %1842 = vmatpush2.msra.mxu0 0.0
    %1843 = vmatprep.subr.mxu0 0.0
    %1844 = vmatpush2.msra.mxu0 0.0
    %1845 = vmatprep.subr.mxu0 0.0
    %1846 = vmatpush2.msra.mxu0 0.0
    %1847 = vmatprep.subr.mxu0 0.0
    %1848 = vmatpush2.msra.mxu0 0.0
    %1849 = vmatprep.subr.mxu0 0.0
    %1850 = vmatpush2.msra.mxu0 %v1766
    %1851 = vmatprep.subr.mxu0 0.0
    %1852 = vmatpush2.msra.mxu0 %v1761
    %1853 = vmatprep.mubr.f32.mxu0 %v1778
    %1854 = vmatmul.mubr.f32.gmra.mxu0 %v1769
    %v1855 = vpop.f32.mrf.mxu0
    %v1856 = vadd.f32 0.0, %v1855
    %v1857 = vpop.f32.mrf.mxu0
    %1858 = vmatprep.mubr.f32.mxu0 %v1781
    %1859 = vmatmul.mubr.f32.gmra.mxu0 %v1771
    %v1860 = vpop.f32.mrf.mxu0
    %v1861 = vadd.f32 0.0, %v1860
    %v1862 = vpop.f32.mrf.mxu0
    %1863 = vmatprep.mubr.f32.mxu0 %v1784
    %1864 = vmatmul.mubr.f32.gmra.mxu0 %v1773
    %v1865 = vpop.f32.mrf.mxu0
    %v1866 = vadd.f32 0.0, %v1865
    %v1867 = vpop.f32.mrf.mxu0
    %1868 = vmatprep.mubr.f32.mxu0 %v1787
    %1869 = vmatmul.mubr.f32.gmra.mxu0 %v1775
    %v1870 = vpop.f32.mrf.mxu0
    %v1871 = vadd.f32 0.0, %v1870
    %v1872 = vpop.f32.mrf.mxu0
    %1873 = vdwg.mxu0
    %v1874 = vld [vmem:[#allocation6 + $0x28] sm:$0xff]
    %v1875 = vld [vmem:[#allocation6 + $0x58] sm:$0xff]
    %v1876 = vld [vmem:[#allocation6 + $0x88] sm:$0xff]
    %v1877 = vld [vmem:[#allocation6 + $0xb8] sm:$0xff]
    %1879 = vset.pattern.permute.xlu0 6
    %1880 = vperm.xlu0 %1879, %v1874
    %v1881 = vpop.permute.xlu0 %1880
    %1884 = vset.pattern.permute.xlu0 6
    %1885 = vperm.xlu0 %1884, %v1875
    %v1886 = vpop.permute.xlu0 %1885
    %1889 = vset.pattern.permute.xlu0 6
    %1890 = vperm.xlu0 %1889, %v1876
    %v1891 = vpop.permute.xlu0 %1890
    %1894 = vset.pattern.permute.xlu0 6
    %1895 = vperm.xlu0 %1894, %v1877
    %v1896 = vpop.permute.xlu0 %1895
    %v1898 = vadd.f32 %v1856, %v1881
    %v1899 = vadd.f32 %v1861, %v1886
    %v1900 = vadd.f32 %v1866, %v1891
    %v1901 = vadd.f32 %v1871, %v1896
    %v1902 = vsel %vm1093, %v1898, 0.0
    %1903 = vadd.xlane.f32.xlu0 %v1902
    %v1904 = vpop.xlane.xlu0 %1903
    %v1905 = vsel %vm1093, %v1899, 0.0
    %1906 = vadd.xlane.f32.xlu0 %v1905
    %v1907 = vpop.xlane.xlu0 %1906
    %v1908 = vsel %vm1093, %v1900, 0.0
    %1909 = vadd.xlane.f32.xlu0 %v1908
    %v1910 = vpop.xlane.xlu0 %1909
    %v1911 = vsel %vm1093, %v1901, 0.0
    %1912 = vadd.xlane.f32.xlu0 %v1911
    %v1913 = vpop.xlane.xlu0 %1912
    %v1914 = vmul.f32 %v1898, %v1898
    %v1915 = vmul.f32 %v1899, %v1899
    %v1916 = vmul.f32 %v1900, %v1900
    %v1917 = vmul.f32 %v1901, %v1901
    %v1918 = vsel %vm1093, %v1914, 0.0
    %1919 = vadd.xlane.f32.xlu0 %v1918
    %v1920 = vpop.xlane.xlu0 %1919
    %v1921 = vsel %vm1093, %v1915, 0.0
    %1922 = vadd.xlane.f32.xlu0 %v1921
    %v1923 = vpop.xlane.xlu0 %1922
    %v1924 = vsel %vm1093, %v1916, 0.0
    %1925 = vadd.xlane.f32.xlu0 %v1924
    %v1926 = vpop.xlane.xlu0 %1925
    %v1927 = vsel %vm1093, %v1917, 0.0
    %1928 = vadd.xlane.f32.xlu0 %v1927
    %v1929 = vpop.xlane.xlu0 %1928
    %1930 = vrot.lane.b32.xlu0 %v1874, 88
    %v1931 = vpop.permute.xlu0 %1930
    %1932 = vrot.lane.b32.xlu0 %v1875, 88
    %v1933 = vpop.permute.xlu0 %1932
    %1934 = vrot.lane.b32.xlu0 %v1876, 88
    %v1935 = vpop.permute.xlu0 %1934
    %1936 = vrot.lane.b32.xlu0 %v1877, 88
    %v1937 = vpop.permute.xlu0 %1936
    %vm1938 = vcmask 261120
    %v1939 = vsel %vm1938, %v1931, 0
    %v1941 = vsel %vm1938, %v1933, 0
    %v1943 = vsel %vm1938, %v1935, 0
    %v1945 = vsel %vm1938, %v1937, 0
    %1947 = vmatprep.subr.mxu0 0.0
    %1948 = vmatpush1.msra.mxu0 0.0
    %1949 = vmatprep.subr.mxu0 0.0
    %1950 = vmatpush1.msra.mxu0 0.0
    %1951 = vmatprep.subr.mxu0 0.0
    %1952 = vmatpush1.msra.mxu0 0.0
    %1953 = vmatprep.subr.mxu0 0.0
    %1954 = vmatpush1.msra.mxu0 0.0
    %1955 = vmatprep.subr.mxu0 0.0
    %1956 = vmatpush1.msra.mxu0 0.0
    %1957 = vmatprep.subr.mxu0 0.0
    %1958 = vmatpush1.msra.mxu0 0.0
    %1959 = vmatprep.subr.mxu0 0.0
    %1960 = vmatpush1.msra.mxu0 0.0
    %1961 = vmatprep.subr.mxu0 0.0
    %1962 = vmatpush1.msra.mxu0 0.0
    %1963 = vmatprep.subr.mxu0 0.0
    %1964 = vmatpush1.msra.mxu0 0.0
    %1965 = vmatprep.subr.mxu0 0.0
    %1966 = vmatpush1.msra.mxu0 0.0
    %1967 = vmatprep.subr.mxu0 0.0
    %1968 = vmatpush1.msra.mxu0 0.0
    %1969 = vmatprep.subr.mxu0 0.0
    %1970 = vmatpush1.msra.mxu0 0.0
    %1971 = vmatprep.subr.mxu0 0.0
    %1972 = vmatpush1.msra.mxu0 %v1913
    %1973 = vmatprep.subr.mxu0 0.0
    %1974 = vmatpush1.msra.mxu0 %v1910
    %1975 = vmatprep.subr.mxu0 0.0
    %1976 = vmatpush1.msra.mxu0 %v1907
    %1977 = vmatprep.subr.mxu0 0.0
    %1978 = vmatpush1.msra.mxu0 %v1904
    %1979 = vmatprep.subr.mxu0 0.0
    %1980 = vmatpush2.msra.mxu0 0.0
    %1981 = vmatprep.subr.mxu0 0.0
    %1982 = vmatpush2.msra.mxu0 0.0
    %1983 = vmatprep.subr.mxu0 0.0
    %1984 = vmatpush2.msra.mxu0 0.0
    %1985 = vmatprep.subr.mxu0 0.0
    %1986 = vmatpush2.msra.mxu0 0.0
    %1987 = vmatprep.subr.mxu0 0.0
    %1988 = vmatpush2.msra.mxu0 0.0
    %1989 = vmatprep.subr.mxu0 0.0
    %1990 = vmatpush2.msra.mxu0 0.0
    %1991 = vmatprep.subr.mxu0 0.0
    %1992 = vmatpush2.msra.mxu0 0.0
    %1993 = vmatprep.subr.mxu0 0.0
    %1994 = vmatpush2.msra.mxu0 0.0
    %1995 = vmatprep.subr.mxu0 0.0
    %1996 = vmatpush2.msra.mxu0 0.0
    %1997 = vmatprep.subr.mxu0 0.0
    %1998 = vmatpush2.msra.mxu0 0.0
    %1999 = vmatprep.subr.mxu0 0.0
    %2000 = vmatpush2.msra.mxu0 0.0
    %2001 = vmatprep.subr.mxu0 0.0
    %2002 = vmatpush2.msra.mxu0 0.0
    %2003 = vmatprep.subr.mxu0 0.0
    %2004 = vmatpush2.msra.mxu0 0.0
    %2005 = vmatprep.subr.mxu0 0.0
    %2006 = vmatpush2.msra.mxu0 0.0
    %2007 = vmatprep.subr.mxu0 0.0
    %2008 = vmatpush2.msra.mxu0 0.0
    %2009 = vmatprep.subr.mxu0 0.0
    %2010 = vmatpush2.msra.mxu0 0.0
    %2011 = vmatprep.mubr.f32.mxu0 0.0
    %2012 = vmatmul.mubr.f32.gmra.mxu0 %v1939
    %v2013 = vpop.f32.mrf.mxu0
    %v2014 = vadd.f32 0.0, %v2013
    %v2015 = vpop.f32.mrf.mxu0
    %2016 = vmatprep.mubr.f32.mxu0 0.0
    %2017 = vmatmul.mubr.f32.gmra.mxu0 %v1941
    %v2018 = vpop.f32.mrf.mxu0
    %v2019 = vadd.f32 0.0, %v2018
    %v2020 = vpop.f32.mrf.mxu0
    %2021 = vmatprep.mubr.f32.mxu0 0.0
    %2022 = vmatmul.mubr.f32.gmra.mxu0 %v1943
    %v2023 = vpop.f32.mrf.mxu0
    %v2024 = vadd.f32 0.0, %v2023
    %v2025 = vpop.f32.mrf.mxu0
    %2026 = vmatprep.mubr.f32.mxu0 0.0
    %2027 = vmatmul.mubr.f32.gmra.mxu0 %v1945
    %v2028 = vpop.f32.mrf.mxu0
    %v2029 = vadd.f32 0.0, %v2028
    %v2030 = vpop.f32.mrf.mxu0
    %2031 = vdwg.mxu0
    %2032 = vmatprep.subr.mxu0 0.0
    %2033 = vmatpush1.msra.mxu0 0.0
    %2034 = vmatprep.subr.mxu0 0.0
    %2035 = vmatpush1.msra.mxu0 0.0
    %2036 = vmatprep.subr.mxu0 0.0
    %2037 = vmatpush1.msra.mxu0 0.0
    %2038 = vmatprep.subr.mxu0 0.0
    %2039 = vmatpush1.msra.mxu0 0.0
    %2040 = vmatprep.subr.mxu0 0.0
    %2041 = vmatpush1.msra.mxu0 0.0
    %2042 = vmatprep.subr.mxu0 0.0
    %2043 = vmatpush1.msra.mxu0 0.0
    %2044 = vmatprep.subr.mxu0 0.0
    %2045 = vmatpush1.msra.mxu0 0.0
    %2046 = vmatprep.subr.mxu0 0.0
    %2047 = vmatpush1.msra.mxu0 0.0
    %2048 = vmatprep.subr.mxu0 0.0
    %2049 = vmatpush1.msra.mxu0 0.0
    %2050 = vmatprep.subr.mxu0 0.0
    %2051 = vmatpush1.msra.mxu0 0.0
    %2052 = vmatprep.subr.mxu0 0.0
    %2053 = vmatpush1.msra.mxu0 0.0
    %2054 = vmatprep.subr.mxu0 0.0
    %2055 = vmatpush1.msra.mxu0 0.0
    %2056 = vmatprep.subr.mxu0 0.0
    %2057 = vmatpush1.msra.mxu0 %v1929
    %2058 = vmatprep.subr.mxu0 0.0
    %2059 = vmatpush1.msra.mxu0 %v1926
    %2060 = vmatprep.subr.mxu0 0.0
    %2061 = vmatpush1.msra.mxu0 %v1923
    %2062 = vmatprep.subr.mxu0 0.0
    %2063 = vmatpush1.msra.mxu0 %v1920
    %2064 = vmatprep.subr.mxu0 0.0
    %2065 = vmatpush2.msra.mxu0 0.0
    %2066 = vmatprep.subr.mxu0 0.0
    %2067 = vmatpush2.msra.mxu0 0.0
    %2068 = vmatprep.subr.mxu0 0.0
    %2069 = vmatpush2.msra.mxu0 0.0
    %2070 = vmatprep.subr.mxu0 0.0
    %2071 = vmatpush2.msra.mxu0 0.0
    %2072 = vmatprep.subr.mxu0 0.0
    %2073 = vmatpush2.msra.mxu0 0.0
    %2074 = vmatprep.subr.mxu0 0.0
    %2075 = vmatpush2.msra.mxu0 0.0
    %2076 = vmatprep.subr.mxu0 0.0
    %2077 = vmatpush2.msra.mxu0 0.0
    %2078 = vmatprep.subr.mxu0 0.0
    %2079 = vmatpush2.msra.mxu0 0.0
    %2080 = vmatprep.subr.mxu0 0.0
    %2081 = vmatpush2.msra.mxu0 0.0
    %2082 = vmatprep.subr.mxu0 0.0
    %2083 = vmatpush2.msra.mxu0 0.0
    %2084 = vmatprep.subr.mxu0 0.0
    %2085 = vmatpush2.msra.mxu0 0.0
    %2086 = vmatprep.subr.mxu0 0.0
    %2087 = vmatpush2.msra.mxu0 0.0
    %2088 = vmatprep.subr.mxu0 0.0
    %2089 = vmatpush2.msra.mxu0 0.0
    %2090 = vmatprep.subr.mxu0 0.0
    %2091 = vmatpush2.msra.mxu0 0.0
    %2092 = vmatprep.subr.mxu0 0.0
    %2093 = vmatpush2.msra.mxu0 0.0
    %2094 = vmatprep.subr.mxu0 0.0
    %2095 = vmatpush2.msra.mxu0 0.0
    %2096 = vmatprep.mubr.f32.mxu0 0.0
    %2097 = vmatmul.mubr.f32.gmra.mxu0 %v1939
    %v2098 = vpop.f32.mrf.mxu0
    %v2099 = vadd.f32 0.0, %v2098
    %v2100 = vpop.f32.mrf.mxu0
    %2101 = vmatprep.mubr.f32.mxu0 0.0
    %2102 = vmatmul.mubr.f32.gmra.mxu0 %v1941
    %v2103 = vpop.f32.mrf.mxu0
    %v2104 = vadd.f32 0.0, %v2103
    %v2105 = vpop.f32.mrf.mxu0
    %2106 = vmatprep.mubr.f32.mxu0 0.0
    %2107 = vmatmul.mubr.f32.gmra.mxu0 %v1943
    %v2108 = vpop.f32.mrf.mxu0
    %v2109 = vadd.f32 0.0, %v2108
    %v2110 = vpop.f32.mrf.mxu0
    %2111 = vmatprep.mubr.f32.mxu0 0.0
    %2112 = vmatmul.mubr.f32.gmra.mxu0 %v1945
    %v2113 = vpop.f32.mrf.mxu0
    %v2114 = vadd.f32 0.0, %v2113
    %v2115 = vpop.f32.mrf.mxu0
    %2116 = vdwg.mxu0
    %v2117 = vmul.f32 %v2014, %v2014
    %v2118 = vmul.f32 %v2019, %v2019
    %v2119 = vmul.f32 %v2024, %v2024
    %v2120 = vmul.f32 %v2029, %v2029
    %v2121 = vsub.f32 %v2099, %v2117
    %v2122 = vsub.f32 %v2104, %v2118
    %v2123 = vsub.f32 %v2109, %v2119
    %v2124 = vsub.f32 %v2114, %v2120
    %v2125 = vadd.f32 %v2121, 1e-05
    %v2126 = vadd.f32 %v2122, 1e-05
    %v2127 = vadd.f32 %v2123, 1e-05
    %v2128 = vadd.f32 %v2124, 1e-05
    %v2129 = vrsqrt.pop %v2125
    %v2130 = vrsqrt.pop %v2126
    %v2131 = vrsqrt.pop %v2127
    %v2132 = vrsqrt.pop %v2128
    %2137 = vrot.lane.b32.xlu0 %v2129, 7
    %v2138 = vpop.permute.xlu0 %2137
    %2139 = vrot.lane.b32.xlu0 %v2130, 7
    %v2140 = vpop.permute.xlu0 %2139
    %2141 = vrot.lane.b32.xlu0 %v2131, 7
    %v2142 = vpop.permute.xlu0 %2141
    %2143 = vrot.lane.b32.xlu0 %v2132, 7
    %v2144 = vpop.permute.xlu0 %2143
    %v2149 = vmul.f32 %v1874, %v2138
    %v2150 = vmul.f32 %v1875, %v2140
    %v2151 = vmul.f32 %v1876, %v2142
    %v2152 = vmul.f32 %v1877, %v2144
    %2157 = vrot.lane.b32.xlu0 %v2149, 121
    %v2158 = vpop.permute.xlu0 %2157
    %2159 = vrot.lane.b32.xlu0 %v2150, 121
    %v2160 = vpop.permute.xlu0 %2159
    %2161 = vrot.lane.b32.xlu0 %v2151, 121
    %v2162 = vpop.permute.xlu0 %2161
    %2163 = vrot.lane.b32.xlu0 %v2152, 121
    %v2164 = vpop.permute.xlu0 %2163
    %v2169 = vmul.f32 %v2014, %v2158
    %v2170 = vmul.f32 %v2019, %v2160
    %v2171 = vmul.f32 %v2024, %v2162
    %v2172 = vmul.f32 %v2029, %v2164
    %2177 = vrot.lane.b32.xlu0 %v2169, 8
    %v2178 = vpop.permute.xlu0 %2177
    %2179 = vrot.lane.b32.xlu0 %v2170, 8
    %v2180 = vpop.permute.xlu0 %2179
    %2181 = vrot.lane.b32.xlu0 %v2171, 8
    %v2182 = vpop.permute.xlu0 %2181
    %2183 = vrot.lane.b32.xlu0 %v2172, 8
    %v2184 = vpop.permute.xlu0 %2183
    %v2189 = vsub.f32 %v1874, %v2178
    %v2190 = vsub.f32 %v1875, %v2180
    %v2191 = vsub.f32 %v1876, %v2182
    %v2192 = vsub.f32 %v1877, %v2184
    %2193 = vset.pattern.permute.xlu0 7
    %2194 = vperm.xlu0 %2193, %v2149
    %v2195 = vpop.permute.xlu0 %2194
    %2197 = vset.pattern.permute.xlu0 7
    %2198 = vperm.xlu0 %2197, %v2150
    %v2199 = vpop.permute.xlu0 %2198
    %2201 = vset.pattern.permute.xlu0 7
    %2202 = vperm.xlu0 %2201, %v2151
    %v2203 = vpop.permute.xlu0 %2202
    %2205 = vset.pattern.permute.xlu0 7
    %2206 = vperm.xlu0 %2205, %v2152
    %v2207 = vpop.permute.xlu0 %2206
    %v2209 = vmul.f32 %v1898, %v2195
    %v2210 = vmul.f32 %v1899, %v2199
    %v2211 = vmul.f32 %v1900, %v2203
    %v2212 = vmul.f32 %v1901, %v2207
    %2214 = vset.pattern.permute.xlu0 8
    %2215 = vperm.xlu0 %2214, %v2189
    %v2216 = vpop.permute.xlu0 %2215
    %2219 = vset.pattern.permute.xlu0 8
    %2220 = vperm.xlu0 %2219, %v2190
    %v2221 = vpop.permute.xlu0 %2220
    %2224 = vset.pattern.permute.xlu0 8
    %2225 = vperm.xlu0 %2224, %v2191
    %v2226 = vpop.permute.xlu0 %2225
    %2229 = vset.pattern.permute.xlu0 8
    %2230 = vperm.xlu0 %2229, %v2192
    %v2231 = vpop.permute.xlu0 %2230
    %v2233 = vadd.f32 %v2209, %v2216
    %v2234 = vadd.f32 %v2210, %v2221
    %v2235 = vadd.f32 %v2211, %v2226
    %v2236 = vadd.f32 %v2212, %v2231
    %v2237 = vsel %vm1093, %v2233, 0.0
    %2238 = vadd.xlane.f32.xlu0 %v2237
    %v2239 = vpop.xlane.xlu0 %2238
    %v2240 = vsel %vm1093, %v2234, 0.0
    %2241 = vadd.xlane.f32.xlu0 %v2240
    %v2242 = vpop.xlane.xlu0 %2241
    %v2243 = vsel %vm1093, %v2235, 0.0
    %2244 = vadd.xlane.f32.xlu0 %v2243
    %v2245 = vpop.xlane.xlu0 %2244
    %v2246 = vsel %vm1093, %v2236, 0.0
    %2247 = vadd.xlane.f32.xlu0 %v2246
    %v2248 = vpop.xlane.xlu0 %2247
    %v2249 = vmul.f32 %v2233, %v2233
    %v2250 = vmul.f32 %v2234, %v2234
    %v2251 = vmul.f32 %v2235, %v2235
    %v2252 = vmul.f32 %v2236, %v2236
    %v2253 = vsel %vm1093, %v2249, 0.0
    %2254 = vadd.xlane.f32.xlu0 %v2253
    %v2255 = vpop.xlane.xlu0 %2254
    %v2256 = vsel %vm1093, %v2250, 0.0
    %2257 = vadd.xlane.f32.xlu0 %v2256
    %v2258 = vpop.xlane.xlu0 %2257
    %v2259 = vsel %vm1093, %v2251, 0.0
    %2260 = vadd.xlane.f32.xlu0 %v2259
    %v2261 = vpop.xlane.xlu0 %2260
    %v2262 = vsel %vm1093, %v2252, 0.0
    %2263 = vadd.xlane.f32.xlu0 %v2262
    %v2264 = vpop.xlane.xlu0 %2263
    %2265 = vmatprep.subr.mxu0 0.0
    %2266 = vmatpush1.msra.mxu0 0.0
    %2267 = vmatprep.subr.mxu0 0.0
    %2268 = vmatpush1.msra.mxu0 0.0
    %2269 = vmatprep.subr.mxu0 0.0
    %2270 = vmatpush1.msra.mxu0 0.0
    %2271 = vmatprep.subr.mxu0 0.0
    %2272 = vmatpush1.msra.mxu0 0.0
    %2273 = vmatprep.subr.mxu0 0.0
    %2274 = vmatpush1.msra.mxu0 0.0
    %2275 = vmatprep.subr.mxu0 0.0
    %2276 = vmatpush1.msra.mxu0 0.0
    %2277 = vmatprep.subr.mxu0 0.0
    %2278 = vmatpush1.msra.mxu0 0.0
    %2279 = vmatprep.subr.mxu0 0.0
    %2280 = vmatpush1.msra.mxu0 0.0
    %2281 = vmatprep.subr.mxu0 0.0
    %2282 = vmatpush1.msra.mxu0 0.0
    %2283 = vmatprep.subr.mxu0 0.0
    %2284 = vmatpush1.msra.mxu0 0.0
    %2285 = vmatprep.subr.mxu0 0.0
    %2286 = vmatpush1.msra.mxu0 0.0
    %2287 = vmatprep.subr.mxu0 0.0
    %2288 = vmatpush1.msra.mxu0 0.0
    %2289 = vmatprep.subr.mxu0 0.0
    %2290 = vmatpush1.msra.mxu0 %v2248
    %2291 = vmatprep.subr.mxu0 0.0
    %2292 = vmatpush1.msra.mxu0 %v2245
    %2293 = vmatprep.subr.mxu0 0.0
    %2294 = vmatpush1.msra.mxu0 %v2242
    %2295 = vmatprep.subr.mxu0 0.0
    %2296 = vmatpush1.msra.mxu0 %v2239
    %2297 = vmatprep.subr.mxu0 0.0
    %2298 = vmatpush2.msra.mxu0 0.0
    %2299 = vmatprep.subr.mxu0 0.0
    %2300 = vmatpush2.msra.mxu0 0.0
    %2301 = vmatprep.subr.mxu0 0.0
    %2302 = vmatpush2.msra.mxu0 0.0
    %2303 = vmatprep.subr.mxu0 0.0
    %2304 = vmatpush2.msra.mxu0 0.0
    %2305 = vmatprep.subr.mxu0 0.0
    %2306 = vmatpush2.msra.mxu0 0.0
    %2307 = vmatprep.subr.mxu0 0.0
    %2308 = vmatpush2.msra.mxu0 0.0
    %2309 = vmatprep.subr.mxu0 0.0
    %2310 = vmatpush2.msra.mxu0 0.0
    %2311 = vmatprep.subr.mxu0 0.0
    %2312 = vmatpush2.msra.mxu0 0.0
    %2313 = vmatprep.subr.mxu0 0.0
    %2314 = vmatpush2.msra.mxu0 0.0
    %2315 = vmatprep.subr.mxu0 0.0
    %2316 = vmatpush2.msra.mxu0 0.0
    %2317 = vmatprep.subr.mxu0 0.0
    %2318 = vmatpush2.msra.mxu0 0.0
    %2319 = vmatprep.subr.mxu0 0.0
    %2320 = vmatpush2.msra.mxu0 0.0
    %2321 = vmatprep.subr.mxu0 0.0
    %2322 = vmatpush2.msra.mxu0 0.0
    %2323 = vmatprep.subr.mxu0 0.0
    %2324 = vmatpush2.msra.mxu0 0.0
    %2325 = vmatprep.subr.mxu0 0.0
    %2326 = vmatpush2.msra.mxu0 0.0
    %2327 = vmatprep.subr.mxu0 0.0
    %2328 = vmatpush2.msra.mxu0 0.0
    %2329 = vmatprep.mubr.f32.mxu0 0.0
    %2330 = vmatmul.mubr.f32.gmra.mxu0 %v1939
    %v2331 = vpop.f32.mrf.mxu0
    %v2332 = vadd.f32 0.0, %v2331
    %v2333 = vpop.f32.mrf.mxu0
    %2334 = vmatprep.mubr.f32.mxu0 0.0
    %2335 = vmatmul.mubr.f32.gmra.mxu0 %v1941
    %v2336 = vpop.f32.mrf.mxu0
    %v2337 = vadd.f32 0.0, %v2336
    %v2338 = vpop.f32.mrf.mxu0
    %2339 = vmatprep.mubr.f32.mxu0 0.0
    %2340 = vmatmul.mubr.f32.gmra.mxu0 %v1943
    %v2341 = vpop.f32.mrf.mxu0
    %v2342 = vadd.f32 0.0, %v2341
    %v2343 = vpop.f32.mrf.mxu0
    %2344 = vmatprep.mubr.f32.mxu0 0.0
    %2345 = vmatmul.mubr.f32.gmra.mxu0 %v1945
    %v2346 = vpop.f32.mrf.mxu0
    %v2347 = vadd.f32 0.0, %v2346
    %v2348 = vpop.f32.mrf.mxu0
    %2349 = vdwg.mxu0
    %2350 = vmatprep.subr.mxu0 0.0
    %2351 = vmatpush1.msra.mxu0 0.0
    %2352 = vmatprep.subr.mxu0 0.0
    %2353 = vmatpush1.msra.mxu0 0.0
    %2354 = vmatprep.subr.mxu0 0.0
    %2355 = vmatpush1.msra.mxu0 0.0
    %2356 = vmatprep.subr.mxu0 0.0
    %2357 = vmatpush1.msra.mxu0 0.0
    %2358 = vmatprep.subr.mxu0 0.0
    %2359 = vmatpush1.msra.mxu0 0.0
    %2360 = vmatprep.subr.mxu0 0.0
    %2361 = vmatpush1.msra.mxu0 0.0
    %2362 = vmatprep.subr.mxu0 0.0
    %2363 = vmatpush1.msra.mxu0 0.0
    %2364 = vmatprep.subr.mxu0 0.0
    %2365 = vmatpush1.msra.mxu0 0.0
    %2366 = vmatprep.subr.mxu0 0.0
    %2367 = vmatpush1.msra.mxu0 0.0
    %2368 = vmatprep.subr.mxu0 0.0
    %2369 = vmatpush1.msra.mxu0 0.0
    %2370 = vmatprep.subr.mxu0 0.0
    %2371 = vmatpush1.msra.mxu0 0.0
    %2372 = vmatprep.subr.mxu0 0.0
    %2373 = vmatpush1.msra.mxu0 0.0
    %2374 = vmatprep.subr.mxu0 0.0
    %2375 = vmatpush1.msra.mxu0 %v2264
    %2376 = vmatprep.subr.mxu0 0.0
    %2377 = vmatpush1.msra.mxu0 %v2261
    %2378 = vmatprep.subr.mxu0 0.0
    %2379 = vmatpush1.msra.mxu0 %v2258
    %2380 = vmatprep.subr.mxu0 0.0
    %2381 = vmatpush1.msra.mxu0 %v2255
    %2382 = vmatprep.subr.mxu0 0.0
    %2383 = vmatpush2.msra.mxu0 0.0
    %2384 = vmatprep.subr.mxu0 0.0
    %2385 = vmatpush2.msra.mxu0 0.0
    %2386 = vmatprep.subr.mxu0 0.0
    %2387 = vmatpush2.msra.mxu0 0.0
    %2388 = vmatprep.subr.mxu0 0.0
    %2389 = vmatpush2.msra.mxu0 0.0
    %2390 = vmatprep.subr.mxu0 0.0
    %2391 = vmatpush2.msra.mxu0 0.0
    %2392 = vmatprep.subr.mxu0 0.0
    %2393 = vmatpush2.msra.mxu0 0.0
    %2394 = vmatprep.subr.mxu0 0.0
    %2395 = vmatpush2.msra.mxu0 0.0
    %2396 = vmatprep.subr.mxu0 0.0
    %2397 = vmatpush2.msra.mxu0 0.0
    %2398 = vmatprep.subr.mxu0 0.0
    %2399 = vmatpush2.msra.mxu0 0.0
    %2400 = vmatprep.subr.mxu0 0.0
    %2401 = vmatpush2.msra.mxu0 0.0
    %2402 = vmatprep.subr.mxu0 0.0
    %2403 = vmatpush2.msra.mxu0 0.0
    %2404 = vmatprep.subr.mxu0 0.0
    %2405 = vmatpush2.msra.mxu0 0.0
    %2406 = vmatprep.subr.mxu0 0.0
    %2407 = vmatpush2.msra.mxu0 0.0
    %2408 = vmatprep.subr.mxu0 0.0
    %2409 = vmatpush2.msra.mxu0 0.0
    %2410 = vmatprep.subr.mxu0 0.0
    %2411 = vmatpush2.msra.mxu0 0.0
    %2412 = vmatprep.subr.mxu0 0.0
    %2413 = vmatpush2.msra.mxu0 0.0
    %2414 = vmatprep.mubr.f32.mxu0 0.0
    %2415 = vmatmul.mubr.f32.gmra.mxu0 %v1939
    %v2416 = vpop.f32.mrf.mxu0
    %v2417 = vadd.f32 0.0, %v2416
    %v2418 = vpop.f32.mrf.mxu0
    %2419 = vmatprep.mubr.f32.mxu0 0.0
    %2420 = vmatmul.mubr.f32.gmra.mxu0 %v1941
    %v2421 = vpop.f32.mrf.mxu0
    %v2422 = vadd.f32 0.0, %v2421
    %v2423 = vpop.f32.mrf.mxu0
    %2424 = vmatprep.mubr.f32.mxu0 0.0
    %2425 = vmatmul.mubr.f32.gmra.mxu0 %v1943
    %v2426 = vpop.f32.mrf.mxu0
    %v2427 = vadd.f32 0.0, %v2426
    %v2428 = vpop.f32.mrf.mxu0
    %2429 = vmatprep.mubr.f32.mxu0 0.0
    %2430 = vmatmul.mubr.f32.gmra.mxu0 %v1945
    %v2431 = vpop.f32.mrf.mxu0
    %v2432 = vadd.f32 0.0, %v2431
    %v2433 = vpop.f32.mrf.mxu0
    %2434 = vdwg.mxu0
    %v2435 = vmul.f32 %v2332, %v2332
    %v2436 = vmul.f32 %v2337, %v2337
    %v2437 = vmul.f32 %v2342, %v2342
    %v2438 = vmul.f32 %v2347, %v2347
    %v2439 = vsub.f32 %v2417, %v2435
    %v2440 = vsub.f32 %v2422, %v2436
    %v2441 = vsub.f32 %v2427, %v2437
    %v2442 = vsub.f32 %v2432, %v2438
    %v2443 = vadd.f32 %v2439, 1e-05
    %v2444 = vadd.f32 %v2440, 1e-05
    %v2445 = vadd.f32 %v2441, 1e-05
    %v2446 = vadd.f32 %v2442, 1e-05
    %v2447 = vrsqrt.pop %v2443
    %v2448 = vrsqrt.pop %v2444
    %v2449 = vrsqrt.pop %v2445
    %v2450 = vrsqrt.pop %v2446
    %2455 = vrot.lane.b32.xlu0 %v2447, 9
    %v2456 = vpop.permute.xlu0 %2455
    %2457 = vrot.lane.b32.xlu0 %v2448, 9
    %v2458 = vpop.permute.xlu0 %2457
    %2459 = vrot.lane.b32.xlu0 %v2449, 9
    %v2460 = vpop.permute.xlu0 %2459
    %2461 = vrot.lane.b32.xlu0 %v2450, 9
    %v2462 = vpop.permute.xlu0 %2461
    %v2467 = vmul.f32 %v1874, %v2456
    %v2468 = vmul.f32 %v1875, %v2458
    %v2469 = vmul.f32 %v1876, %v2460
    %v2470 = vmul.f32 %v1877, %v2462
    %2475 = vrot.lane.b32.xlu0 %v2467, 119
    %v2476 = vpop.permute.xlu0 %2475
    %2477 = vrot.lane.b32.xlu0 %v2468, 119
    %v2478 = vpop.permute.xlu0 %2477
    %2479 = vrot.lane.b32.xlu0 %v2469, 119
    %v2480 = vpop.permute.xlu0 %2479
    %2481 = vrot.lane.b32.xlu0 %v2470, 119
    %v2482 = vpop.permute.xlu0 %2481
    %v2487 = vmul.f32 %v2332, %v2476
    %v2488 = vmul.f32 %v2337, %v2478
    %v2489 = vmul.f32 %v2342, %v2480
    %v2490 = vmul.f32 %v2347, %v2482
    %2495 = vrot.lane.b32.xlu0 %v2487, 10
    %v2496 = vpop.permute.xlu0 %2495
    %2497 = vrot.lane.b32.xlu0 %v2488, 10
    %v2498 = vpop.permute.xlu0 %2497
    %2499 = vrot.lane.b32.xlu0 %v2489, 10
    %v2500 = vpop.permute.xlu0 %2499
    %2501 = vrot.lane.b32.xlu0 %v2490, 10
    %v2502 = vpop.permute.xlu0 %2501
    %v2507 = vsub.f32 %v1874, %v2496
    %v2508 = vsub.f32 %v1875, %v2498
    %v2509 = vsub.f32 %v1876, %v2500
    %v2510 = vsub.f32 %v1877, %v2502
    %2511 = vset.pattern.permute.xlu0 9
    %2512 = vperm.xlu0 %2511, %v2467
    %v2513 = vpop.permute.xlu0 %2512
    %2515 = vset.pattern.permute.xlu0 9
    %2516 = vperm.xlu0 %2515, %v2468
    %v2517 = vpop.permute.xlu0 %2516
    %2519 = vset.pattern.permute.xlu0 9
    %2520 = vperm.xlu0 %2519, %v2469
    %v2521 = vpop.permute.xlu0 %2520
    %2523 = vset.pattern.permute.xlu0 9
    %2524 = vperm.xlu0 %2523, %v2470
    %v2525 = vpop.permute.xlu0 %2524
    %v2527 = vmul.f32 %v2233, %v2513
    %v2528 = vmul.f32 %v2234, %v2517
    %v2529 = vmul.f32 %v2235, %v2521
    %v2530 = vmul.f32 %v2236, %v2525
    %2532 = vset.pattern.permute.xlu0 10
    %2533 = vperm.xlu0 %2532, %v2507
    %v2534 = vpop.permute.xlu0 %2533
    %2537 = vset.pattern.permute.xlu0 10
    %2538 = vperm.xlu0 %2537, %v2508
    %v2539 = vpop.permute.xlu0 %2538
    %2542 = vset.pattern.permute.xlu0 10
    %2543 = vperm.xlu0 %2542, %v2509
    %v2544 = vpop.permute.xlu0 %2543
    %2547 = vset.pattern.permute.xlu0 10
    %2548 = vperm.xlu0 %2547, %v2510
    %v2549 = vpop.permute.xlu0 %2548
    %v2551 = vadd.f32 %v2527, %v2534
    %v2552 = vadd.f32 %v2528, %v2539
    %v2553 = vadd.f32 %v2529, %v2544
    %v2554 = vadd.f32 %v2530, %v2549
    %v2555 = vld [vmem:[#allocation6 + $0x20] sm:$0x3]
    %v2556 = vld [vmem:[#allocation6 + $0x28] sm:$0x3]
    %2558 = vset.pattern.permute.xlu0 11
    %2559 = vperm.xlu0 %2558, %v2556
    %v2560 = vpop.permute.xlu0 %2559
    %v2563 = vsel %vm1938, %v2555, 0
    %2565 = vmatprep.subr.mxu0 0.0
    %2566 = vmatpush1.msra.mxu0 0.0
    %2567 = vmatprep.subr.mxu0 0.0
    %2568 = vmatpush1.msra.mxu0 0.0
    %2569 = vmatprep.subr.mxu0 0.0
    %2570 = vmatpush1.msra.mxu0 0.0
    %2571 = vmatprep.subr.mxu0 0.0
    %2572 = vmatpush1.msra.mxu0 0.0
    %2573 = vmatprep.subr.mxu0 0.0
    %2574 = vmatpush1.msra.mxu0 0.0
    %2575 = vmatprep.subr.mxu0 0.0
    %2576 = vmatpush1.msra.mxu0 0.0
    %2577 = vmatprep.subr.mxu0 0.0
    %2578 = vmatpush1.msra.mxu0 0.0
    %2579 = vmatprep.subr.mxu0 0.0
    %2580 = vmatpush1.msra.mxu0 0.0
    %2581 = vmatprep.subr.mxu0 0.0
    %2582 = vmatpush1.msra.mxu0 0.0
    %2583 = vmatprep.subr.mxu0 0.0
    %2584 = vmatpush1.msra.mxu0 0.0
    %2585 = vmatprep.subr.mxu0 0.0
    %2586 = vmatpush1.msra.mxu0 0.0
    %2587 = vmatprep.subr.mxu0 0.0
    %2588 = vmatpush1.msra.mxu0 0.0
    %2589 = vmatprep.subr.mxu0 0.0
    %2590 = vmatpush1.msra.mxu0 %v2554
    %2591 = vmatprep.subr.mxu0 0.0
    %2592 = vmatpush1.msra.mxu0 %v2553
    %2593 = vmatprep.subr.mxu0 0.0
    %2594 = vmatpush1.msra.mxu0 %v2552
    %2595 = vmatprep.subr.mxu0 0.0
    %2596 = vmatpush1.msra.mxu0 %v2551
    %2597 = vmatprep.subr.mxu0 0.0
    %2598 = vmatpush2.msra.mxu0 0.0
    %2599 = vmatprep.subr.mxu0 0.0
    %2600 = vmatpush2.msra.mxu0 0.0
    %2601 = vmatprep.subr.mxu0 0.0
    %2602 = vmatpush2.msra.mxu0 0.0
    %2603 = vmatprep.subr.mxu0 0.0
    %2604 = vmatpush2.msra.mxu0 0.0
    %2605 = vmatprep.subr.mxu0 0.0
    %2606 = vmatpush2.msra.mxu0 0.0
    %2607 = vmatprep.subr.mxu0 0.0
    %2608 = vmatpush2.msra.mxu0 0.0
    %2609 = vmatprep.subr.mxu0 0.0
    %2610 = vmatpush2.msra.mxu0 0.0
    %2611 = vmatprep.subr.mxu0 0.0
    %2612 = vmatpush2.msra.mxu0 0.0
    %2613 = vmatprep.subr.mxu0 0.0
    %2614 = vmatpush2.msra.mxu0 0.0
    %2615 = vmatprep.subr.mxu0 0.0
    %2616 = vmatpush2.msra.mxu0 0.0
    %2617 = vmatprep.subr.mxu0 0.0
    %2618 = vmatpush2.msra.mxu0 0.0
    %2619 = vmatprep.subr.mxu0 0.0
    %2620 = vmatpush2.msra.mxu0 0.0
    %2621 = vmatprep.subr.mxu0 0.0
    %2622 = vmatpush2.msra.mxu0 0.0
    %2623 = vmatprep.subr.mxu0 0.0
    %2624 = vmatpush2.msra.mxu0 0.0
    %2625 = vmatprep.subr.mxu0 0.0
    %2626 = vmatpush2.msra.mxu0 0.0
    %2627 = vmatprep.subr.mxu0 0.0
    %2628 = vmatpush2.msra.mxu0 0.0
    %2629 = vmatprep.mubr.f32.mxu0 0.0
    %2630 = vmatmul.mubr.f32.gmra.mxu0 %v2563
    %v2631 = vpop.f32.mrf.mxu0
    %v2632 = vadd.f32 %v2560, %v2631
    %v2633 = vpop.f32.mrf.mxu0
    %2634 = vdwg.mxu0
    %vm2635 = vcmask 123904
    %2636 = vst.msk [vmem:[%s4] sm:$0x3] %vm2635, %v2632
    // Predicated region
    $region30: #{tmnet_forward.1} parent=1 // pred_check
      _
    $region31: #{tmnet_forward.1} parent=1 // pred_check_branch
      %2638 = sbr.rel (0) target = $region33
    $region32: #{tmnet_forward.1} parent=1 // pred_region
      _
    $region33: #{tmnet_forward.1} parent=1 // pred_fallthru
      _
    // Predicated region
    $region34: #{tmnet_forward.1} parent=1 // pred_check
      _
    $region35: #{tmnet_forward.1} parent=1 // pred_check_branch
      %2640 = sbr.rel (0) target = $region37
    $region36: #{tmnet_forward.1} parent=1 // pred_region
      _
    $region37: #{tmnet_forward.1} parent=1 // pred_fallthru
      _
    %2641 = vsyncpa [#allocation3], 1
    %2642 = vsyncpa [#allocation5], 1

</llo_original>
